<compile_context>
chip_gen: v7x
topology: tpu7x:2x2x1
jax: 0.10.0
libtpu: 0.0.40
codegen_flags: <defaults>
</compile_context>

<pallas_src>
import functools

import numpy as np

import jax
import jax.numpy as jnp
from jax.experimental import pallas as pl
from jax.experimental.pallas import tpu as pltpu


def _block_kernel(x_ref, w_ref, maskx_ref, b_ref, gamma_ref, beta_ref, m_ref,
                  o_ref, pad_ref, col_ref, *, width, guard, eps):
    # x_ref:     (Bt, Cin_pad, HW)        f32  Bt images, spatial flattened on lanes
    # w_ref:     (Cout, 9*Cin_pad)        bf16 w[o, k*Cin_pad+c] = weight[o,c,dy,dx], k=dy*3+dx
    # maskx_ref: (2, HW)                  f32  row0: zero where x==0, row1: zero where x==W-1
    # b_ref:     (Cout, 1)                f32  conv bias
    # gamma_ref: (Cout, 1)                f32  GroupNorm scale
    # beta_ref:  (Cout, 1)                f32  GroupNorm shift
    # m_ref:     (Cout, groups)           f32  one-hot channel -> group membership
    # o_ref:     (Bt, Cout, HW)           output block
    # pad_ref:   (Cin_pad, HW + 2*guard)  f32  scratch: flat image with zero guard strips
    # col_ref:   (9*Cin_pad, Bt*HW)       bf16 scratch: im2col matrix for all Bt images
    bt, cout, hw = o_ref.shape
    cin_pad = x_ref.shape[1]
    w = width
    off = guard  # left guard width; multiple of 128 so the interior store is aligned

    # Zero ONLY the two guard strips (aligned, full-width stores).  The interior
    # is fully overwritten per image below, so no full-buffer memset is needed.
    pad_ref[:, 0:off] = jnp.zeros((cin_pad, off), pad_ref.dtype)
    pad_ref[:, off + hw:off + hw + off] = jnp.zeros((cin_pad, off), pad_ref.dtype)

    mask_l = maskx_ref[0:1, :]   # kills x == 0   positions (taps with dx offset -1)
    mask_r = maskx_ref[1:2, :]   # kills x == W-1 positions (taps with dx offset +1)

    # ---- im2col for all Bt images: columns [b*HW, (b+1)*HW) hold image b ----
    for b in range(bt):
        # Interior store at lane offset `guard` (multiple of 128): unmasked,
        # fully tile-aligned f32 store.
        pad_ref[:, off:off + hw] = x_ref[b]
        for k in range(9):
            dy, dx = divmod(k, 3)
            shift = (dy - 1) * w + (dx - 1)
            tap = pad_ref[:, off + shift:off + shift + hw]      # (Cin_pad, HW) f32
            # Vertical out-of-image taps read the zero guard strips, so only
            # horizontal wrap needs a mask; the 3 dx-offset-0 taps need none.
            if dx == 0:
                tap = tap * mask_l                              # f32 VPU math (v5e)
            elif dx == 2:
                tap = tap * mask_r
            col_ref[k * cin_pad:(k + 1) * cin_pad, b * hw:(b + 1) * hw] = (
                tap.astype(jnp.bfloat16))

    # ---- conv: ONE bf16 matmul, f32 accumulation; K = 9*Cin_pad, N = Bt*HW ----
    acc = jnp.dot(w_ref[...], col_ref[...],
                  preferred_element_type=jnp.float32)           # (Cout, Bt*HW)
    acc = acc + b_ref[...]                                      # (Cout, 1) broadcast

    # ---- GroupNorm (per image, two-pass, f32) + SiLU ----
    groups = m_ref.shape[1]
    n = float((cout // groups) * hw)
    m = m_ref[...]
    gamma = gamma_ref[...]
    beta = beta_ref[...]
    # TODO(synk): at production sizes (H*W >= 4k, Cin~Cout~256) add an HW-strip
    # grid axis with a two-pass (stats, then normalize) structure and do the
    # spatial sums as a ones-vector matmul on the MXU; re-derive the strip size
    # for v7x's 64 MiB VMEM separately from v5e/v6e's 128 MiB.
    for b in range(bt):
        a = acc[:, b * hw:(b + 1) * hw]                         # lane-aligned slice
        ch_sum = jnp.sum(a, axis=1, keepdims=True)              # (Cout, 1)
        g_mean = jnp.sum(m * ch_sum, axis=0, keepdims=True) / n # (1, groups)
        mean_c = jnp.sum(m * g_mean, axis=1, keepdims=True)     # (Cout, 1)
        cen = a - mean_c
        ch_sq = jnp.sum(cen * cen, axis=1, keepdims=True)       # (Cout, 1)
        g_var = jnp.sum(m * ch_sq, axis=0, keepdims=True) / n   # (1, groups)
        inv_c = jnp.sum(m * jax.lax.rsqrt(g_var + eps),
                        axis=1, keepdims=True)                  # (Cout, 1)
        y = cen * (inv_c * gamma) + beta
        o_ref[b] = (y * jax.nn.sigmoid(y)).astype(o_ref.dtype)


def _pick_batch_tile(batch, max_bt=8):
    """Largest divisor of `batch` <= max_bt that keeps >=2 grid steps (v7x megacore)."""
    best = 1
    for bt in range(1, min(batch, max_bt) + 1):
        if batch % bt == 0 and (batch // bt >= 2 or batch == 1):
            best = bt
    return best


def block_forward(x_nchw, weight, bias, gamma, beta, *, groups=8, eps=1e-5,
                  out_dtype=None):
    """Pallas implementation of Block.forward.  x_nchw: (B, Cin, H, W)."""
    B, Cin, H, W = x_nchw.shape
    Cout = weight.shape[0]
    assert Cout % groups == 0
    HW = H * W
    assert HW % 128 == 0, "kernel expects H*W to be a multiple of 128 lanes"
    out_dtype = x_nchw.dtype if out_dtype is None else out_dtype

    guard = ((W + 1 + 127) // 128) * 128   # lane-aligned guard strip width

    # Pad input channels to a multiple of 8 so every im2col tap slab is a full,
    # 8-sublane-aligned block (zero-padded weight columns keep the math exact).
    # At production channel counts this is a no-op.
    Cin_pad = ((Cin + 7) // 8) * 8
    x3 = x_nchw.reshape(B, Cin, HW).astype(jnp.float32)         # free reshape
    if Cin_pad != Cin:
        x3 = jnp.pad(x3, ((0, 0), (0, Cin_pad - Cin), (0, 0)))

    # Small constants hoisted out of the kernel.
    w_t = jnp.transpose(weight, (0, 2, 3, 1)).astype(jnp.float32)   # (Cout,3,3,Cin)
    if Cin_pad != Cin:
        w_t = jnp.pad(w_t, ((0, 0), (0, 0), (0, 0), (0, Cin_pad - Cin)))
    w_mat = w_t.reshape(Cout, 9 * Cin_pad).astype(jnp.bfloat16)     # (Cout, 9*Cin_pad)
    b2 = bias.reshape(Cout, 1).astype(jnp.float32)
    g2 = gamma.reshape(Cout, 1).astype(jnp.float32)
    bt2 = beta.reshape(Cout, 1).astype(jnp.float32)

    xs = np.arange(HW) % W
    maskx = np.stack([(xs != 0), (xs != W - 1)], axis=0).astype(np.float32)
    maskx = jnp.asarray(maskx)                                       # (2, HW)

    Cg = Cout // groups
    m_np = (np.arange(Cout).reshape(Cout, 1) // Cg
            == np.arange(groups).reshape(1, groups)).astype(np.float32)
    m_mat = jnp.asarray(m_np)                                        # (Cout, groups)

    Bt = _pick_batch_tile(B)
    num_steps = B // Bt

    kernel = functools.partial(_block_kernel, width=W, guard=guard, eps=eps)

    cost = pl.CostEstimate(
        flops=2 * B * Cout * 9 * Cin_pad * HW + 10 * B * Cout * HW,
        transcendentals=B * Cout * HW,
        bytes_accessed=(B * Cin_pad * HW * 4
                        + B * Cout * HW * jnp.dtype(out_dtype).itemsize
                        + Cout * 9 * Cin_pad * 2 + 2 * HW * 4
                        + (3 * Cout + Cout * groups) * 4),
    )

    out3 = pl.pallas_call(
        kernel,
        out_shape=jax.ShapeDtypeStruct((B, Cout, HW), out_dtype),
        grid_spec=pltpu.PrefetchScalarGridSpec(
            num_scalar_prefetch=0,
            grid=(num_steps,),
            in_specs=[
                pl.BlockSpec((Bt, Cin_pad, HW), lambda i: (i, 0, 0)),
                pl.BlockSpec((Cout, 9 * Cin_pad), lambda i: (0, 0)),
                pl.BlockSpec((2, HW), lambda i: (0, 0)),
                pl.BlockSpec((Cout, 1), lambda i: (0, 0)),
                pl.BlockSpec((Cout, 1), lambda i: (0, 0)),
                pl.BlockSpec((Cout, 1), lambda i: (0, 0)),
                pl.BlockSpec((Cout, groups), lambda i: (0, 0)),
            ],
            out_specs=pl.BlockSpec((Bt, Cout, HW), lambda i: (i, 0, 0)),
            scratch_shapes=[
                pltpu.VMEM((Cin_pad, HW + 2 * guard), jnp.float32),
                pltpu.VMEM((9 * Cin_pad, Bt * HW), jnp.bfloat16),
            ],
        ),
        compiler_params=pltpu.CompilerParams(
            dimension_semantics=("parallel",),
            vmem_limit_bytes=32 * 1024 * 1024,
        ),
        cost_estimate=cost,
    )(x3, w_mat, maskx, b2, g2, bt2, m_mat)

    return out3.reshape(B, Cout, H, W)   # free reshape back to NCHW


def _reference(x_nchw, weight, bias, gamma, beta, *, groups=8, eps=1e-5,
               conv_dtype=jnp.float32):
    """Pure-JAX reference matching PyTorch semantics (NCHW).

    conv_dtype=bfloat16 mimics the kernel's bf16-in/f32-accumulate conv so the
    Pallas kernel can be checked with a tight tolerance; conv_dtype=float32 is
    the full-precision reference.
    """
    y = jax.lax.conv_general_dilated(
        x_nchw.astype(conv_dtype), weight.astype(conv_dtype),
        window_strides=(1, 1), padding="SAME",
        dimension_numbers=("NCHW", "OIHW", "NCHW"),
        preferred_element_type=jnp.float32,
        precision=jax.lax.Precision.HIGHEST)
    y = y.astype(jnp.float32) + bias[None, :, None, None]
    B, C, H, W = y.shape
    yg = y.reshape(B, groups, C // groups, H, W)
    mean = yg.mean(axis=(2, 3, 4), keepdims=True)
    var = ((yg - mean) ** 2).mean(axis=(2, 3, 4), keepdims=True)
    yn = ((yg - mean) * jax.lax.rsqrt(var + eps)).reshape(B, C, H, W)
    yn = yn * gamma[None, :, None, None] + beta[None, :, None, None]
    return yn * jax.nn.sigmoid(yn)


if __name__ == "__main__":
    # B=4 so the batching path is exercised (Bt=2 per step) while the grid
    # keeps 2 "parallel" steps for v7x's two TensorCores.
    B, Cin, Cout, H, W, groups = 4, 4, 16, 16, 16, 8

    key = jax.random.PRNGKey(0)
    k1, k2, k3, k4, k5 = jax.random.split(key, 5)
    x = jax.random.normal(k1, (B, Cin, H, W), jnp.float32)
    conv_w = 0.1 * jax.random.normal(k2, (Cout, Cin, 3, 3), jnp.float32)
    conv_b = 0.1 * jax.random.normal(k3, (Cout,), jnp.float32)
    gn_gamma = 1.0 + 0.1 * jax.random.normal(k4, (Cout,), jnp.float32)
    gn_beta = 0.1 * jax.random.normal(k5, (Cout,), jnp.float32)

    fwd = jax.jit(functools.partial(block_forward, groups=groups))
    out = jax.block_until_ready(fwd(x, conv_w, conv_b, gn_gamma, gn_beta))
    assert out.shape == (B, Cout, H, W)

    # (1) Tight check vs. a reference whose conv matches the kernel's
    #     bf16-inputs / f32-accumulation MXU path.
    ref_bf16 = _reference(x, conv_w, conv_b, gn_gamma, gn_beta,
                          groups=groups, conv_dtype=jnp.bfloat16)
    err_bf16 = float(jnp.max(jnp.abs(out - ref_bf16)))
    assert err_bf16 < 2e-3, f"mismatch vs bf16-conv reference: {err_bf16}"

    # (2) Sanity check vs. the full-f32 reference (bf16 conv inputs introduce
    #     ~1e-2-scale error on GroupNorm-normalized O(1) outputs).
    ref_f32 = _reference(x, conv_w, conv_b, gn_gamma, gn_beta,
                         groups=groups, conv_dtype=jnp.float32)
    err_f32 = float(jnp.max(jnp.abs(out - ref_f32)))
    assert err_f32 < 5e-2, f"mismatch vs f32 reference: {err_f32}"

    print("KERNEL_OK")
</pallas_src>

<mosaic_0001>
module attributes {stable_mosaic.version = 11 : i64} {
  func.func @_block_kernel(%arg0: i32, %arg1: memref<2x8x256xf32, #tpu.memory_space<vmem>>, %arg2: memref<16x72xbf16, #tpu.memory_space<vmem>>, %arg3: memref<2x256xf32, #tpu.memory_space<vmem>>, %arg4: memref<16x1xf32, #tpu.memory_space<vmem>>, %arg5: memref<16x1xf32, #tpu.memory_space<vmem>>, %arg6: memref<16x1xf32, #tpu.memory_space<vmem>>, %arg7: memref<16x8xf32, #tpu.memory_space<vmem>>, %arg8: memref<2x16x256xf32, #tpu.memory_space<vmem>>, %arg9: memref<8x512xf32, #tpu.memory_space<vmem>>, %arg10: memref<72x512xbf16, #tpu.memory_space<vmem>>) attributes {dimension_semantics = [#tpu.dimension_semantics<parallel>], iteration_bounds = array<i64: 2>, scalar_prefetch = 0 : i64, scratch_operands = 2 : i64, tpu.core_type = #tpu.core_type<tc>, window_params = [{transform_indices = @transform_0, window_bounds = array<i64: 2, 8, 256>}, {pipeline_mode = #tpu.pipeline_mode<synchronous>, transform_indices = @transform_1, window_bounds = array<i64: 16, 72>}, {pipeline_mode = #tpu.pipeline_mode<synchronous>, transform_indices = @transform_2, window_bounds = array<i64: 2, 256>}, {pipeline_mode = #tpu.pipeline_mode<synchronous>, transform_indices = @transform_3, window_bounds = array<i64: 16, 1>}, {pipeline_mode = #tpu.pipeline_mode<synchronous>, transform_indices = @transform_4, window_bounds = array<i64: 16, 1>}, {pipeline_mode = #tpu.pipeline_mode<synchronous>, transform_indices = @transform_5, window_bounds = array<i64: 16, 1>}, {pipeline_mode = #tpu.pipeline_mode<synchronous>, transform_indices = @transform_6, window_bounds = array<i64: 16, 8>}, {transform_indices = @transform_7, window_bounds = array<i64: 2, 16, 256>}]} {
    %cst = arith.constant 0.000000e+00 : f32
    %0 = vector.broadcast %cst : f32 to vector<8x128xf32>
    %c0 = arith.constant 0 : index
    %c0_0 = arith.constant 0 : index
    %1 = vector.load %arg9[%c0, %c0_0] : memref<8x512xf32, #tpu.memory_space<vmem>>, vector<8x128xf32>
    tpu.vector_store %arg9[%c0, %c0_0], %0 {strides = array<i32>} : memref<8x512xf32, #tpu.memory_space<vmem>>, vector<8x128xf32>,
    %cst_1 = arith.constant 0.000000e+00 : f32
    %2 = vector.broadcast %cst_1 : f32 to vector<8x128xf32>
    %c0_2 = arith.constant 0 : index
    %c384 = arith.constant 384 : index
    %3 = vector.load %arg9[%c0_2, %c384] : memref<8x512xf32, #tpu.memory_space<vmem>>, vector<8x128xf32>
    tpu.vector_store %arg9[%c0_2, %c384], %2 {strides = array<i32>} : memref<8x512xf32, #tpu.memory_space<vmem>>, vector<8x128xf32>,
    %c0_3 = arith.constant 0 : index
    %c0_4 = arith.constant 0 : index
    %4 = vector.load %arg3[%c0_3, %c0_4] : memref<2x256xf32, #tpu.memory_space<vmem>>, vector<1x256xf32>
    %c1 = arith.constant 1 : index
    %c0_5 = arith.constant 0 : index
    %5 = vector.load %arg3[%c1, %c0_5] : memref<2x256xf32, #tpu.memory_space<vmem>>, vector<1x256xf32>
    %c0_6 = arith.constant 0 : index
    %c0_7 = arith.constant 0 : index
    %c0_8 = arith.constant 0 : index
    %6 = vector.load %arg1[%c0_6, %c0_7, %c0_8] : memref<2x8x256xf32, #tpu.memory_space<vmem>>, vector<1x8x256xf32>
    %7 = vector.shape_cast %6 : vector<1x8x256xf32> to vector<8x256xf32>
    %c0_9 = arith.constant 0 : index
    %c128 = arith.constant 128 : index
    %8 = vector.load %arg9[%c0_9, %c128] : memref<8x512xf32, #tpu.memory_space<vmem>>, vector<8x256xf32>
    tpu.vector_store %arg9[%c0_9, %c128], %7 {strides = array<i32>} : memref<8x512xf32, #tpu.memory_space<vmem>>, vector<8x256xf32>,
    %c0_10 = arith.constant 0 : index
    %c111 = arith.constant 111 : index
    %9 = vector.load %arg9[%c0_10, %c111] : memref<8x512xf32, #tpu.memory_space<vmem>>, vector<8x256xf32>
    %10 = vector.broadcast %4 : vector<1x256xf32> to vector<8x256xf32>
    %11 = arith.mulf %9, %10 : vector<8x256xf32>
    %12 = arith.truncf %11 : vector<8x256xf32> to vector<8x256xbf16>
    %c0_11 = arith.constant 0 : index
    %c0_12 = arith.constant 0 : index
    %13 = vector.load %arg10[%c0_11, %c0_12] : memref<72x512xbf16, #tpu.memory_space<vmem>>, vector<8x256xbf16>
    tpu.vector_store %arg10[%c0_11, %c0_12], %12 {strides = array<i32>} : memref<72x512xbf16, #tpu.memory_space<vmem>>, vector<8x256xbf16>,
    %c0_13 = arith.constant 0 : index
    %c112 = arith.constant 112 : index
    %14 = vector.load %arg9[%c0_13, %c112] : memref<8x512xf32, #tpu.memory_space<vmem>>, vector<8x256xf32>
    %15 = arith.truncf %14 : vector<8x256xf32> to vector<8x256xbf16>
    %c8 = arith.constant 8 : index
    %c0_14 = arith.constant 0 : index
    %16 = vector.load %arg10[%c8, %c0_14] : memref<72x512xbf16, #tpu.memory_space<vmem>>, vector<8x256xbf16>
    tpu.vector_store %arg10[%c8, %c0_14], %15 {strides = array<i32>} : memref<72x512xbf16, #tpu.memory_space<vmem>>, vector<8x256xbf16>,
    %c0_15 = arith.constant 0 : index
    %c113 = arith.constant 113 : index
    %17 = vector.load %arg9[%c0_15, %c113] : memref<8x512xf32, #tpu.memory_space<vmem>>, vector<8x256xf32>
    %18 = vector.broadcast %5 : vector<1x256xf32> to vector<8x256xf32>
    %19 = arith.mulf %17, %18 : vector<8x256xf32>
    %20 = arith.truncf %19 : vector<8x256xf32> to vector<8x256xbf16>
    %c16 = arith.constant 16 : index
    %c0_16 = arith.constant 0 : index
    %21 = vector.load %arg10[%c16, %c0_16] : memref<72x512xbf16, #tpu.memory_space<vmem>>, vector<8x256xbf16>
    tpu.vector_store %arg10[%c16, %c0_16], %20 {strides = array<i32>} : memref<72x512xbf16, #tpu.memory_space<vmem>>, vector<8x256xbf16>,
    %c0_17 = arith.constant 0 : index
    %c127 = arith.constant 127 : index
    %22 = vector.load %arg9[%c0_17, %c127] : memref<8x512xf32, #tpu.memory_space<vmem>>, vector<8x256xf32>
    %23 = vector.broadcast %4 : vector<1x256xf32> to vector<8x256xf32>
    %24 = arith.mulf %22, %23 : vector<8x256xf32>
    %25 = arith.truncf %24 : vector<8x256xf32> to vector<8x256xbf16>
    %c24 = arith.constant 24 : index
    %c0_18 = arith.constant 0 : index
    %26 = vector.load %arg10[%c24, %c0_18] : memref<72x512xbf16, #tpu.memory_space<vmem>>, vector<8x256xbf16>
    tpu.vector_store %arg10[%c24, %c0_18], %25 {strides = array<i32>} : memref<72x512xbf16, #tpu.memory_space<vmem>>, vector<8x256xbf16>,
    %c0_19 = arith.constant 0 : index
    %c128_20 = arith.constant 128 : index
    %27 = vector.load %arg9[%c0_19, %c128_20] : memref<8x512xf32, #tpu.memory_space<vmem>>, vector<8x256xf32>
    %28 = arith.truncf %27 : vector<8x256xf32> to vector<8x256xbf16>
    %c32 = arith.constant 32 : index
    %c0_21 = arith.constant 0 : index
    %29 = vector.load %arg10[%c32, %c0_21] : memref<72x512xbf16, #tpu.memory_space<vmem>>, vector<8x256xbf16>
    tpu.vector_store %arg10[%c32, %c0_21], %28 {strides = array<i32>} : memref<72x512xbf16, #tpu.memory_space<vmem>>, vector<8x256xbf16>,
    %c0_22 = arith.constant 0 : index
    %c129 = arith.constant 129 : index
    %30 = vector.load %arg9[%c0_22, %c129] : memref<8x512xf32, #tpu.memory_space<vmem>>, vector<8x256xf32>
    %31 = vector.broadcast %5 : vector<1x256xf32> to vector<8x256xf32>
    %32 = arith.mulf %30, %31 : vector<8x256xf32>
    %33 = arith.truncf %32 : vector<8x256xf32> to vector<8x256xbf16>
    %c40 = arith.constant 40 : index
    %c0_23 = arith.constant 0 : index
    %34 = vector.load %arg10[%c40, %c0_23] : memref<72x512xbf16, #tpu.memory_space<vmem>>, vector<8x256xbf16>
    tpu.vector_store %arg10[%c40, %c0_23], %33 {strides = array<i32>} : memref<72x512xbf16, #tpu.memory_space<vmem>>, vector<8x256xbf16>,
    %c0_24 = arith.constant 0 : index
    %c143 = arith.constant 143 : index
    %35 = vector.load %arg9[%c0_24, %c143] : memref<8x512xf32, #tpu.memory_space<vmem>>, vector<8x256xf32>
    %36 = vector.broadcast %4 : vector<1x256xf32> to vector<8x256xf32>
    %37 = arith.mulf %35, %36 : vector<8x256xf32>
    %38 = arith.truncf %37 : vector<8x256xf32> to vector<8x256xbf16>
    %c48 = arith.constant 48 : index
    %c0_25 = arith.constant 0 : index
    %39 = vector.load %arg10[%c48, %c0_25] : memref<72x512xbf16, #tpu.memory_space<vmem>>, vector<8x256xbf16>
    tpu.vector_store %arg10[%c48, %c0_25], %38 {strides = array<i32>} : memref<72x512xbf16, #tpu.memory_space<vmem>>, vector<8x256xbf16>,
    %c0_26 = arith.constant 0 : index
    %c144 = arith.constant 144 : index
    %40 = vector.load %arg9[%c0_26, %c144] : memref<8x512xf32, #tpu.memory_space<vmem>>, vector<8x256xf32>
    %41 = arith.truncf %40 : vector<8x256xf32> to vector<8x256xbf16>
    %c56 = arith.constant 56 : index
    %c0_27 = arith.constant 0 : index
    %42 = vector.load %arg10[%c56, %c0_27] : memref<72x512xbf16, #tpu.memory_space<vmem>>, vector<8x256xbf16>
    tpu.vector_store %arg10[%c56, %c0_27], %41 {strides = array<i32>} : memref<72x512xbf16, #tpu.memory_space<vmem>>, vector<8x256xbf16>,
    %c0_28 = arith.constant 0 : index
    %c145 = arith.constant 145 : index
    %43 = vector.load %arg9[%c0_28, %c145] : memref<8x512xf32, #tpu.memory_space<vmem>>, vector<8x256xf32>
    %44 = vector.broadcast %5 : vector<1x256xf32> to vector<8x256xf32>
    %45 = arith.mulf %43, %44 : vector<8x256xf32>
    %46 = arith.truncf %45 : vector<8x256xf32> to vector<8x256xbf16>
    %c64 = arith.constant 64 : index
    %c0_29 = arith.constant 0 : index
    %47 = vector.load %arg10[%c64, %c0_29] : memref<72x512xbf16, #tpu.memory_space<vmem>>, vector<8x256xbf16>
    tpu.vector_store %arg10[%c64, %c0_29], %46 {strides = array<i32>} : memref<72x512xbf16, #tpu.memory_space<vmem>>, vector<8x256xbf16>,
    %c1_30 = arith.constant 1 : index
    %c0_31 = arith.constant 0 : index
    %c0_32 = arith.constant 0 : index
    %48 = vector.load %arg1[%c1_30, %c0_31, %c0_32] : memref<2x8x256xf32, #tpu.memory_space<vmem>>, vector<1x8x256xf32>
    %49 = vector.shape_cast %48 : vector<1x8x256xf32> to vector<8x256xf32>
    %c0_33 = arith.constant 0 : index
    %c128_34 = arith.constant 128 : index
    %50 = vector.load %arg9[%c0_33, %c128_34] : memref<8x512xf32, #tpu.memory_space<vmem>>, vector<8x256xf32>
    tpu.vector_store %arg9[%c0_33, %c128_34], %49 {strides = array<i32>} : memref<8x512xf32, #tpu.memory_space<vmem>>, vector<8x256xf32>,
    %c0_35 = arith.constant 0 : index
    %c111_36 = arith.constant 111 : index
    %51 = vector.load %arg9[%c0_35, %c111_36] : memref<8x512xf32, #tpu.memory_space<vmem>>, vector<8x256xf32>
    %52 = vector.broadcast %4 : vector<1x256xf32> to vector<8x256xf32>
    %53 = arith.mulf %51, %52 : vector<8x256xf32>
    %54 = arith.truncf %53 : vector<8x256xf32> to vector<8x256xbf16>
    %c0_37 = arith.constant 0 : index
    %c256 = arith.constant 256 : index
    %55 = vector.load %arg10[%c0_37, %c256] : memref<72x512xbf16, #tpu.memory_space<vmem>>, vector<8x256xbf16>
    tpu.vector_store %arg10[%c0_37, %c256], %54 {strides = array<i32>} : memref<72x512xbf16, #tpu.memory_space<vmem>>, vector<8x256xbf16>,
    %c0_38 = arith.constant 0 : index
    %c112_39 = arith.constant 112 : index
    %56 = vector.load %arg9[%c0_38, %c112_39] : memref<8x512xf32, #tpu.memory_space<vmem>>, vector<8x256xf32>
    %57 = arith.truncf %56 : vector<8x256xf32> to vector<8x256xbf16>
    %c8_40 = arith.constant 8 : index
    %c256_41 = arith.constant 256 : index
    %58 = vector.load %arg10[%c8_40, %c256_41] : memref<72x512xbf16, #tpu.memory_space<vmem>>, vector<8x256xbf16>
    tpu.vector_store %arg10[%c8_40, %c256_41], %57 {strides = array<i32>} : memref<72x512xbf16, #tpu.memory_space<vmem>>, vector<8x256xbf16>,
    %c0_42 = arith.constant 0 : index
    %c113_43 = arith.constant 113 : index
    %59 = vector.load %arg9[%c0_42, %c113_43] : memref<8x512xf32, #tpu.memory_space<vmem>>, vector<8x256xf32>
    %60 = vector.broadcast %5 : vector<1x256xf32> to vector<8x256xf32>
    %61 = arith.mulf %59, %60 : vector<8x256xf32>
    %62 = arith.truncf %61 : vector<8x256xf32> to vector<8x256xbf16>
    %c16_44 = arith.constant 16 : index
    %c256_45 = arith.constant 256 : index
    %63 = vector.load %arg10[%c16_44, %c256_45] : memref<72x512xbf16, #tpu.memory_space<vmem>>, vector<8x256xbf16>
    tpu.vector_store %arg10[%c16_44, %c256_45], %62 {strides = array<i32>} : memref<72x512xbf16, #tpu.memory_space<vmem>>, vector<8x256xbf16>,
    %c0_46 = arith.constant 0 : index
    %c127_47 = arith.constant 127 : index
    %64 = vector.load %arg9[%c0_46, %c127_47] : memref<8x512xf32, #tpu.memory_space<vmem>>, vector<8x256xf32>
    %65 = vector.broadcast %4 : vector<1x256xf32> to vector<8x256xf32>
    %66 = arith.mulf %64, %65 : vector<8x256xf32>
    %67 = arith.truncf %66 : vector<8x256xf32> to vector<8x256xbf16>
    %c24_48 = arith.constant 24 : index
    %c256_49 = arith.constant 256 : index
    %68 = vector.load %arg10[%c24_48, %c256_49] : memref<72x512xbf16, #tpu.memory_space<vmem>>, vector<8x256xbf16>
    tpu.vector_store %arg10[%c24_48, %c256_49], %67 {strides = array<i32>} : memref<72x512xbf16, #tpu.memory_space<vmem>>, vector<8x256xbf16>,
    %c0_50 = arith.constant 0 : index
    %c128_51 = arith.constant 128 : index
    %69 = vector.load %arg9[%c0_50, %c128_51] : memref<8x512xf32, #tpu.memory_space<vmem>>, vector<8x256xf32>
    %70 = arith.truncf %69 : vector<8x256xf32> to vector<8x256xbf16>
    %c32_52 = arith.constant 32 : index
    %c256_53 = arith.constant 256 : index
    %71 = vector.load %arg10[%c32_52, %c256_53] : memref<72x512xbf16, #tpu.memory_space<vmem>>, vector<8x256xbf16>
    tpu.vector_store %arg10[%c32_52, %c256_53], %70 {strides = array<i32>} : memref<72x512xbf16, #tpu.memory_space<vmem>>, vector<8x256xbf16>,
    %c0_54 = arith.constant 0 : index
    %c129_55 = arith.constant 129 : index
    %72 = vector.load %arg9[%c0_54, %c129_55] : memref<8x512xf32, #tpu.memory_space<vmem>>, vector<8x256xf32>
    %73 = vector.broadcast %5 : vector<1x256xf32> to vector<8x256xf32>
    %74 = arith.mulf %72, %73 : vector<8x256xf32>
    %75 = arith.truncf %74 : vector<8x256xf32> to vector<8x256xbf16>
    %c40_56 = arith.constant 40 : index
    %c256_57 = arith.constant 256 : index
    %76 = vector.load %arg10[%c40_56, %c256_57] : memref<72x512xbf16, #tpu.memory_space<vmem>>, vector<8x256xbf16>
    tpu.vector_store %arg10[%c40_56, %c256_57], %75 {strides = array<i32>} : memref<72x512xbf16, #tpu.memory_space<vmem>>, vector<8x256xbf16>,
    %c0_58 = arith.constant 0 : index
    %c143_59 = arith.constant 143 : index
    %77 = vector.load %arg9[%c0_58, %c143_59] : memref<8x512xf32, #tpu.memory_space<vmem>>, vector<8x256xf32>
    %78 = vector.broadcast %4 : vector<1x256xf32> to vector<8x256xf32>
    %79 = arith.mulf %77, %78 : vector<8x256xf32>
    %80 = arith.truncf %79 : vector<8x256xf32> to vector<8x256xbf16>
    %c48_60 = arith.constant 48 : index
    %c256_61 = arith.constant 256 : index
    %81 = vector.load %arg10[%c48_60, %c256_61] : memref<72x512xbf16, #tpu.memory_space<vmem>>, vector<8x256xbf16>
    tpu.vector_store %arg10[%c48_60, %c256_61], %80 {strides = array<i32>} : memref<72x512xbf16, #tpu.memory_space<vmem>>, vector<8x256xbf16>,
    %c0_62 = arith.constant 0 : index
    %c144_63 = arith.constant 144 : index
    %82 = vector.load %arg9[%c0_62, %c144_63] : memref<8x512xf32, #tpu.memory_space<vmem>>, vector<8x256xf32>
    %83 = arith.truncf %82 : vector<8x256xf32> to vector<8x256xbf16>
    %c56_64 = arith.constant 56 : index
    %c256_65 = arith.constant 256 : index
    %84 = vector.load %arg10[%c56_64, %c256_65] : memref<72x512xbf16, #tpu.memory_space<vmem>>, vector<8x256xbf16>
    tpu.vector_store %arg10[%c56_64, %c256_65], %83 {strides = array<i32>} : memref<72x512xbf16, #tpu.memory_space<vmem>>, vector<8x256xbf16>,
    %c0_66 = arith.constant 0 : index
    %c145_67 = arith.constant 145 : index
    %85 = vector.load %arg9[%c0_66, %c145_67] : memref<8x512xf32, #tpu.memory_space<vmem>>, vector<8x256xf32>
    %86 = vector.broadcast %5 : vector<1x256xf32> to vector<8x256xf32>
    %87 = arith.mulf %85, %86 : vector<8x256xf32>
    %88 = arith.truncf %87 : vector<8x256xf32> to vector<8x256xbf16>
    %c64_68 = arith.constant 64 : index
    %c256_69 = arith.constant 256 : index
    %89 = vector.load %arg10[%c64_68, %c256_69] : memref<72x512xbf16, #tpu.memory_space<vmem>>, vector<8x256xbf16>
    tpu.vector_store %arg10[%c64_68, %c256_69], %88 {strides = array<i32>} : memref<72x512xbf16, #tpu.memory_space<vmem>>, vector<8x256xbf16>,
    %c0_70 = arith.constant 0 : index
    %c0_71 = arith.constant 0 : index
    %90 = vector.load %arg2[%c0_70, %c0_71] : memref<16x72xbf16, #tpu.memory_space<vmem>>, vector<16x72xbf16>
    %c0_72 = arith.constant 0 : index
    %c0_73 = arith.constant 0 : index
    %91 = vector.load %arg10[%c0_72, %c0_73] : memref<72x512xbf16, #tpu.memory_space<vmem>>, vector<72x512xbf16>
    %cst_74 = arith.constant dense<0.000000e+00> : vector<16x512xf32>
    %92 = tpu.matmul %90, %91, %cst_74 {dimension_numbers = #tpu.dot_dimension_numbers<[1], [0], [0], [1], [0, 0, 1, 1], [], []>} : vector<16x72xbf16>, vector<72x512xbf16>, vector<16x512xf32> -> vector<16x512xf32>
    %c0_75 = arith.constant 0 : index
    %c0_76 = arith.constant 0 : index
    %93 = vector.load %arg4[%c0_75, %c0_76] : memref<16x1xf32, #tpu.memory_space<vmem>>, vector<16x1xf32>
    %94 = vector.broadcast %93 : vector<16x1xf32> to vector<16x512xf32>
    %95 = arith.addf %92, %94 : vector<16x512xf32>
    %c0_77 = arith.constant 0 : index
    %c0_78 = arith.constant 0 : index
    %96 = vector.load %arg7[%c0_77, %c0_78] : memref<16x8xf32, #tpu.memory_space<vmem>>, vector<16x8xf32>
    %c0_79 = arith.constant 0 : index
    %c0_80 = arith.constant 0 : index
    %97 = vector.load %arg5[%c0_79, %c0_80] : memref<16x1xf32, #tpu.memory_space<vmem>>, vector<16x1xf32>
    %c0_81 = arith.constant 0 : index
    %c0_82 = arith.constant 0 : index
    %98 = vector.load %arg6[%c0_81, %c0_82] : memref<16x1xf32, #tpu.memory_space<vmem>>, vector<16x1xf32>
    %99 = vector.extract_strided_slice %95 {offsets = [0, 0], sizes = [16, 256], strides = [1, 1]} : vector<16x512xf32> to vector<16x256xf32>
    %cst_83 = arith.constant dense<0.000000e+00> : vector<16xf32>
    %100 = vector.multi_reduction <add>, %99, %cst_83 [1] : vector<16x256xf32> to vector<16xf32>
    %101 = vector.shape_cast %100 : vector<16xf32> to vector<16x1xf32>
    %102 = vector.broadcast %101 : vector<16x1xf32> to vector<16x8xf32>
    %103 = arith.mulf %96, %102 : vector<16x8xf32>
    %cst_84 = arith.constant dense<0.000000e+00> : vector<8xf32>
    %104 = vector.multi_reduction <add>, %103, %cst_84 [0] : vector<16x8xf32> to vector<8xf32>
    %105 = vector.shape_cast %104 : vector<8xf32> to vector<1x8xf32>
    %cst_85 = arith.constant 5.120000e+02 : f32
    %106 = vector.broadcast %cst_85 : f32 to vector<1x8xf32>
    %107 = arith.divf %105, %106 : vector<1x8xf32>
    %108 = vector.broadcast %107 : vector<1x8xf32> to vector<16x8xf32>
    %109 = arith.mulf %96, %108 : vector<16x8xf32>
    %cst_86 = arith.constant dense<0.000000e+00> : vector<16xf32>
    %110 = vector.multi_reduction <add>, %109, %cst_86 [1] : vector<16x8xf32> to vector<16xf32>
    %111 = vector.shape_cast %110 : vector<16xf32> to vector<16x1xf32>
    %112 = vector.broadcast %111 : vector<16x1xf32> to vector<16x256xf32>
    %113 = arith.subf %99, %112 : vector<16x256xf32>
    %114 = arith.mulf %113, %113 : vector<16x256xf32>
    %cst_87 = arith.constant dense<0.000000e+00> : vector<16xf32>
    %115 = vector.multi_reduction <add>, %114, %cst_87 [1] : vector<16x256xf32> to vector<16xf32>
    %116 = vector.shape_cast %115 : vector<16xf32> to vector<16x1xf32>
    %117 = vector.broadcast %116 : vector<16x1xf32> to vector<16x8xf32>
    %118 = arith.mulf %96, %117 : vector<16x8xf32>
    %cst_88 = arith.constant dense<0.000000e+00> : vector<8xf32>
    %119 = vector.multi_reduction <add>, %118, %cst_88 [0] : vector<16x8xf32> to vector<8xf32>
    %120 = vector.shape_cast %119 : vector<8xf32> to vector<1x8xf32>
    %cst_89 = arith.constant 5.120000e+02 : f32
    %121 = vector.broadcast %cst_89 : f32 to vector<1x8xf32>
    %122 = arith.divf %120, %121 : vector<1x8xf32>
    %cst_90 = arith.constant 9.99999974E-6 : f32
    %123 = vector.broadcast %cst_90 : f32 to vector<1x8xf32>
    %124 = arith.addf %122, %123 : vector<1x8xf32>
    %125 = math.rsqrt %124 : vector<1x8xf32>
    %126 = vector.broadcast %125 : vector<1x8xf32> to vector<16x8xf32>
    %127 = arith.mulf %96, %126 : vector<16x8xf32>
    %cst_91 = arith.constant dense<0.000000e+00> : vector<16xf32>
    %128 = vector.multi_reduction <add>, %127, %cst_91 [1] : vector<16x8xf32> to vector<16xf32>
    %129 = vector.shape_cast %128 : vector<16xf32> to vector<16x1xf32>
    %130 = arith.mulf %129, %97 : vector<16x1xf32>
    %131 = vector.broadcast %130 : vector<16x1xf32> to vector<16x256xf32>
    %132 = arith.mulf %113, %131 : vector<16x256xf32>
    %133 = vector.broadcast %98 : vector<16x1xf32> to vector<16x256xf32>
    %134 = arith.addf %132, %133 : vector<16x256xf32>
    %135 = arith.negf %134 : vector<16x256xf32>
    %136 = math.exp %135 : vector<16x256xf32>
    %cst_92 = arith.constant 1.000000e+00 : f32
    %137 = vector.broadcast %cst_92 : f32 to vector<16x256xf32>
    %138 = arith.addf %137, %136 : vector<16x256xf32>
    %139 = arith.divf %137, %138 : vector<16x256xf32>
    %140 = arith.mulf %134, %139 : vector<16x256xf32>
    %c0_93 = arith.constant 0 : index
    %c0_94 = arith.constant 0 : index
    %c0_95 = arith.constant 0 : index
    %141 = vector.load %arg8[%c0_93, %c0_94, %c0_95] : memref<2x16x256xf32, #tpu.memory_space<vmem>>, vector<1x16x256xf32>
    %142 = vector.shape_cast %141 : vector<1x16x256xf32> to vector<16x256xf32>
    %143 = vector.shape_cast %140 : vector<16x256xf32> to vector<1x16x256xf32>
    tpu.vector_store %arg8[%c0_93, %c0_94, %c0_95], %143 {strides = array<i32>} : memref<2x16x256xf32, #tpu.memory_space<vmem>>, vector<1x16x256xf32>,
    %144 = vector.extract_strided_slice %95 {offsets = [0, 256], sizes = [16, 256], strides = [1, 1]} : vector<16x512xf32> to vector<16x256xf32>
    %cst_96 = arith.constant dense<0.000000e+00> : vector<16xf32>
    %145 = vector.multi_reduction <add>, %144, %cst_96 [1] : vector<16x256xf32> to vector<16xf32>
    %146 = vector.shape_cast %145 : vector<16xf32> to vector<16x1xf32>
    %147 = vector.broadcast %146 : vector<16x1xf32> to vector<16x8xf32>
    %148 = arith.mulf %96, %147 : vector<16x8xf32>
    %cst_97 = arith.constant dense<0.000000e+00> : vector<8xf32>
    %149 = vector.multi_reduction <add>, %148, %cst_97 [0] : vector<16x8xf32> to vector<8xf32>
    %150 = vector.shape_cast %149 : vector<8xf32> to vector<1x8xf32>
    %cst_98 = arith.constant 5.120000e+02 : f32
    %151 = vector.broadcast %cst_98 : f32 to vector<1x8xf32>
    %152 = arith.divf %150, %151 : vector<1x8xf32>
    %153 = vector.broadcast %152 : vector<1x8xf32> to vector<16x8xf32>
    %154 = arith.mulf %96, %153 : vector<16x8xf32>
    %cst_99 = arith.constant dense<0.000000e+00> : vector<16xf32>
    %155 = vector.multi_reduction <add>, %154, %cst_99 [1] : vector<16x8xf32> to vector<16xf32>
    %156 = vector.shape_cast %155 : vector<16xf32> to vector<16x1xf32>
    %157 = vector.broadcast %156 : vector<16x1xf32> to vector<16x256xf32>
    %158 = arith.subf %144, %157 : vector<16x256xf32>
    %159 = arith.mulf %158, %158 : vector<16x256xf32>
    %cst_100 = arith.constant dense<0.000000e+00> : vector<16xf32>
    %160 = vector.multi_reduction <add>, %159, %cst_100 [1] : vector<16x256xf32> to vector<16xf32>
    %161 = vector.shape_cast %160 : vector<16xf32> to vector<16x1xf32>
    %162 = vector.broadcast %161 : vector<16x1xf32> to vector<16x8xf32>
    %163 = arith.mulf %96, %162 : vector<16x8xf32>
    %cst_101 = arith.constant dense<0.000000e+00> : vector<8xf32>
    %164 = vector.multi_reduction <add>, %163, %cst_101 [0] : vector<16x8xf32> to vector<8xf32>
    %165 = vector.shape_cast %164 : vector<8xf32> to vector<1x8xf32>
    %cst_102 = arith.constant 5.120000e+02 : f32
    %166 = vector.broadcast %cst_102 : f32 to vector<1x8xf32>
    %167 = arith.divf %165, %166 : vector<1x8xf32>
    %cst_103 = arith.constant 9.99999974E-6 : f32
    %168 = vector.broadcast %cst_103 : f32 to vector<1x8xf32>
    %169 = arith.addf %167, %168 : vector<1x8xf32>
    %170 = math.rsqrt %169 : vector<1x8xf32>
    %171 = vector.broadcast %170 : vector<1x8xf32> to vector<16x8xf32>
    %172 = arith.mulf %96, %171 : vector<16x8xf32>
    %cst_104 = arith.constant dense<0.000000e+00> : vector<16xf32>
    %173 = vector.multi_reduction <add>, %172, %cst_104 [1] : vector<16x8xf32> to vector<16xf32>
    %174 = vector.shape_cast %173 : vector<16xf32> to vector<16x1xf32>
    %175 = arith.mulf %174, %97 : vector<16x1xf32>
    %176 = vector.broadcast %175 : vector<16x1xf32> to vector<16x256xf32>
    %177 = arith.mulf %158, %176 : vector<16x256xf32>
    %178 = vector.broadcast %98 : vector<16x1xf32> to vector<16x256xf32>
    %179 = arith.addf %177, %178 : vector<16x256xf32>
    %180 = arith.negf %179 : vector<16x256xf32>
    %181 = math.exp %180 : vector<16x256xf32>
    %cst_105 = arith.constant 1.000000e+00 : f32
    %182 = vector.broadcast %cst_105 : f32 to vector<16x256xf32>
    %183 = arith.addf %182, %181 : vector<16x256xf32>
    %184 = arith.divf %182, %183 : vector<16x256xf32>
    %185 = arith.mulf %179, %184 : vector<16x256xf32>
    %c1_106 = arith.constant 1 : index
    %c0_107 = arith.constant 0 : index
    %c0_108 = arith.constant 0 : index
    %186 = vector.load %arg8[%c1_106, %c0_107, %c0_108] : memref<2x16x256xf32, #tpu.memory_space<vmem>>, vector<1x16x256xf32>
    %187 = vector.shape_cast %186 : vector<1x16x256xf32> to vector<16x256xf32>
    %188 = vector.shape_cast %185 : vector<16x256xf32> to vector<1x16x256xf32>
    tpu.vector_store %arg8[%c1_106, %c0_107, %c0_108], %188 {strides = array<i32>} : memref<2x16x256xf32, #tpu.memory_space<vmem>>, vector<1x16x256xf32>,
    return
  }
  func.func @transform_0(%arg0: i32) -> (i32, i32, i32) {
    %c0_i32 = arith.constant 0 : i32
    %c0_i32_0 = arith.constant 0 : i32
    %c0_i32_1 = arith.constant 0 : i32
    return %arg0, %c0_i32, %c0_i32_0 : i32, i32, i32
  }
  func.func @transform_1(%arg0: i32) -> (i32, i32) {
    %c0_i32 = arith.constant 0 : i32
    %c0_i32_0 = arith.constant 0 : i32
    %c0_i32_1 = arith.constant 0 : i32
    return %c0_i32, %c0_i32_0 : i32, i32
  }
  func.func @transform_2(%arg0: i32) -> (i32, i32) {
    %c0_i32 = arith.constant 0 : i32
    %c0_i32_0 = arith.constant 0 : i32
    %c0_i32_1 = arith.constant 0 : i32
    return %c0_i32, %c0_i32_0 : i32, i32
  }
  func.func @transform_3(%arg0: i32) -> (i32, i32) {
    %c0_i32 = arith.constant 0 : i32
    %c0_i32_0 = arith.constant 0 : i32
    %c0_i32_1 = arith.constant 0 : i32
    return %c0_i32, %c0_i32_0 : i32, i32
  }
  func.func @transform_4(%arg0: i32) -> (i32, i32) {
    %c0_i32 = arith.constant 0 : i32
    %c0_i32_0 = arith.constant 0 : i32
    %c0_i32_1 = arith.constant 0 : i32
    return %c0_i32, %c0_i32_0 : i32, i32
  }
  func.func @transform_5(%arg0: i32) -> (i32, i32) {
    %c0_i32 = arith.constant 0 : i32
    %c0_i32_0 = arith.constant 0 : i32
    %c0_i32_1 = arith.constant 0 : i32
    return %c0_i32, %c0_i32_0 : i32, i32
  }
  func.func @transform_6(%arg0: i32) -> (i32, i32) {
    %c0_i32 = arith.constant 0 : i32
    %c0_i32_0 = arith.constant 0 : i32
    %c0_i32_1 = arith.constant 0 : i32
    return %c0_i32, %c0_i32_0 : i32, i32
  }
  func.func @transform_7(%arg0: i32) -> (i32, i32, i32) {
    %c0_i32 = arith.constant 0 : i32
    %c0_i32_0 = arith.constant 0 : i32
    %c0_i32_1 = arith.constant 0 : i32
    return %arg0, %c0_i32, %c0_i32_0 : i32, i32, i32
  }
}

</mosaic_0001>

<llo_original>
// kernel: block_forward.1
$region0: #{block_forward.1}
  #allocation0 [shape = 'u32[]', space=smem, size = 0x4, offset = 0x4, fixed_abs, tag = 'smem constant byte address 0x4 - core index']
  #allocation1 [shape = 'u32[144,128]{1,0:T(1,128)}', space=vmem, size = 0x12000, scoped, tag = 'internal scratch']
  #allocation2 [shape = 'f32[8,512]{1,0:T(8,128)}', space=vmem, size = 0x4000, scoped, tag = 'scratch operand']
  #allocation3 [shape = 'bf16[72,512]{1,0:T(8,128)(2,1)}', space=vmem, size = 0x12000, scoped, tag = 'scratch operand']
  %s0 = inlined_call_operand.vmem [shape: f32[4,8,256], index: 0, kind: input, shape index: {}]
  %s1 = inlined_call_operand.vmem [shape: bf16[16,72], index: 1, kind: input, shape index: {}]
  %s2 = inlined_call_operand.vmem [shape: f32[2,256], index: 2, kind: input, shape index: {}]
  %s3 = inlined_call_operand.vmem [shape: f32[16,1], index: 3, kind: input, shape index: {}]
  %s4 = inlined_call_operand.vmem [shape: f32[16,1], index: 4, kind: input, shape index: {}]
  %s5 = inlined_call_operand.vmem [shape: f32[16,1], index: 5, kind: input, shape index: {}]
  %s6 = inlined_call_operand.vmem [shape: f32[16,8], index: 6, kind: input, shape index: {}]
  %s7 = inlined_call_operand.vmem [shape: f32[4,16,256], index: 7, kind: output, shape index: {}]
  %s8 = sld [smem:[#allocation0]]
  $region61: #{block_forward.1} parent=0
    _
  %s10 = ssub.s32 1, %s8
  %s11 = scalar_select 0, %s10, %s8
  loop: start=0, step=1, limit=4
  $region2: #{block_forward.1} parent=0 // loop_pre_header
    _
  $region3: #{block_forward.1} parent=0 // loop_header
    %s13 = sphi 0, %s17
    %p14 = scmp.ge.s32.totalorder %s13, 4
    %s23 = sphi 0, %s25
    %s26 = sphi 0, %s23
    %s27 = sphi 0, %s26
    %s43 = sphi 0, %s27
    %s47 = sphi 0, %s47
    %s49 = sphi 0, %s47
    %s50 = sphi 0, %s49
    %s64 = sphi 0, %s50
    %s68 = sphi 0, %s68
    %s70 = sphi 0, %s68
    %s71 = sphi 0, %s70
    %s85 = sphi 0, %s71
    %s89 = sphi 0, %s89
    %s91 = sphi 0, %s89
    %s92 = sphi 0, %s91
    %s106 = sphi 0, %s92
    %s110 = sphi 0, %s110
    %s112 = sphi 0, %s110
    %s113 = sphi 0, %s112
    %s127 = sphi 0, %s113
    %s131 = sphi 0, %s131
    %s133 = sphi 0, %s131
    %s134 = sphi 0, %s133
    %s148 = sphi 0, %s134
    %s152 = sphi 0, %s152
    %s154 = sphi 0, %s152
    %s155 = sphi 0, %s154
    %s169 = sphi 0, %s155
    %s175 = sphi 0, %s177
    %s178 = sphi 0, %s175
    %s179 = sphi 0, %s178
    %s195 = sphi 0, %s179
  $region4: #{block_forward.1} parent=0 // loop_header_branch
    %16 = sbr.rel (%p14) target = $region8
  $region5: #{block_forward.1} parent=0 // loop_body
    %s18 = ssub.s32 %s13, 1
    %s19 = ssub.s32 %s13, 2
    %s20 = sadd.s32 %s13, 1
    %s21 = ssub.s32 %s13, %s20
    %p22 = scmp.eq.s32.totalorder %s21, 0
    %s24 = sadd.s32 %s23, 1
    %s25 = scalar_select %p22, %s23, %s24
    %p28 = pneg %p22
    %p29 = scmp.eq.s32.totalorder %s13, 1
    %p30 = por %p28, %p29
    %p31 = scmp.ne.s32.totalorder %s23, %s26
    %p32 = scmp.eq.s32.totalorder %s13, 0
    %p33 = por %p31, %p32
    %p34 = scmp.ne.s32.totalorder %s23, %s26
    %p35 = scmp.eq.s32.totalorder %s18, 1
    %p36 = por %p34, %p35
    %p37 = scmp.ne.s32.totalorder %s26, %s27
    %p38 = scmp.eq.s32.totalorder %s18, 0
    %p39 = por %p37, %p38
    %p40 = scmp.ne.s32.totalorder %s26, %s27
    %p41 = scmp.eq.s32.totalorder %s19, 1
    %p42 = por %p40, %p41
    %p44 = scmp.ne.s32.totalorder %s27, %s43
    %p45 = scmp.eq.s32.totalorder %s19, 0
    %p46 = por %p44, %p45
    %s48 = sadd.s32 %s47, 1
    %p51 = scmp.eq.s32.totalorder %s13, 1
    %p52 = scmp.ne.s32.totalorder %s47, %s49
    %p53 = scmp.eq.s32.totalorder %s13, 0
    %p54 = por %p52, %p53
    %p55 = scmp.ne.s32.totalorder %s47, %s49
    %p56 = scmp.eq.s32.totalorder %s18, 1
    %p57 = por %p55, %p56
    %p58 = scmp.ne.s32.totalorder %s49, %s50
    %p59 = scmp.eq.s32.totalorder %s18, 0
    %p60 = por %p58, %p59
    %p61 = scmp.ne.s32.totalorder %s49, %s50
    %p62 = scmp.eq.s32.totalorder %s19, 1
    %p63 = por %p61, %p62
    %p65 = scmp.ne.s32.totalorder %s50, %s64
    %p66 = scmp.eq.s32.totalorder %s19, 0
    %p67 = por %p65, %p66
    %s69 = sadd.s32 %s68, 1
    %p72 = scmp.eq.s32.totalorder %s13, 1
    %p73 = scmp.ne.s32.totalorder %s68, %s70
    %p74 = scmp.eq.s32.totalorder %s13, 0
    %p75 = por %p73, %p74
    %p76 = scmp.ne.s32.totalorder %s68, %s70
    %p77 = scmp.eq.s32.totalorder %s18, 1
    %p78 = por %p76, %p77
    %p79 = scmp.ne.s32.totalorder %s70, %s71
    %p80 = scmp.eq.s32.totalorder %s18, 0
    %p81 = por %p79, %p80
    %p82 = scmp.ne.s32.totalorder %s70, %s71
    %p83 = scmp.eq.s32.totalorder %s19, 1
    %p84 = por %p82, %p83
    %p86 = scmp.ne.s32.totalorder %s71, %s85
    %p87 = scmp.eq.s32.totalorder %s19, 0
    %p88 = por %p86, %p87
    %s90 = sadd.s32 %s89, 1
    %p93 = scmp.eq.s32.totalorder %s13, 1
    %p94 = scmp.ne.s32.totalorder %s89, %s91
    %p95 = scmp.eq.s32.totalorder %s13, 0
    %p96 = por %p94, %p95
    %p97 = scmp.ne.s32.totalorder %s89, %s91
    %p98 = scmp.eq.s32.totalorder %s18, 1
    %p99 = por %p97, %p98
    %p100 = scmp.ne.s32.totalorder %s91, %s92
    %p101 = scmp.eq.s32.totalorder %s18, 0
    %p102 = por %p100, %p101
    %p103 = scmp.ne.s32.totalorder %s91, %s92
    %p104 = scmp.eq.s32.totalorder %s19, 1
    %p105 = por %p103, %p104
    %p107 = scmp.ne.s32.totalorder %s92, %s106
    %p108 = scmp.eq.s32.totalorder %s19, 0
    %p109 = por %p107, %p108
    %s111 = sadd.s32 %s110, 1
    %p114 = scmp.eq.s32.totalorder %s13, 1
    %p115 = scmp.ne.s32.totalorder %s110, %s112
    %p116 = scmp.eq.s32.totalorder %s13, 0
    %p117 = por %p115, %p116
    %p118 = scmp.ne.s32.totalorder %s110, %s112
    %p119 = scmp.eq.s32.totalorder %s18, 1
    %p120 = por %p118, %p119
    %p121 = scmp.ne.s32.totalorder %s112, %s113
    %p122 = scmp.eq.s32.totalorder %s18, 0
    %p123 = por %p121, %p122
    %p124 = scmp.ne.s32.totalorder %s112, %s113
    %p125 = scmp.eq.s32.totalorder %s19, 1
    %p126 = por %p124, %p125
    %p128 = scmp.ne.s32.totalorder %s113, %s127
    %p129 = scmp.eq.s32.totalorder %s19, 0
    %p130 = por %p128, %p129
    %s132 = sadd.s32 %s131, 1
    %p135 = scmp.eq.s32.totalorder %s13, 1
    %p136 = scmp.ne.s32.totalorder %s131, %s133
    %p137 = scmp.eq.s32.totalorder %s13, 0
    %p138 = por %p136, %p137
    %p139 = scmp.ne.s32.totalorder %s131, %s133
    %p140 = scmp.eq.s32.totalorder %s18, 1
    %p141 = por %p139, %p140
    %p142 = scmp.ne.s32.totalorder %s133, %s134
    %p143 = scmp.eq.s32.totalorder %s18, 0
    %p144 = por %p142, %p143
    %p145 = scmp.ne.s32.totalorder %s133, %s134
    %p146 = scmp.eq.s32.totalorder %s19, 1
    %p147 = por %p145, %p146
    %p149 = scmp.ne.s32.totalorder %s134, %s148
    %p150 = scmp.eq.s32.totalorder %s19, 0
    %p151 = por %p149, %p150
    %s153 = sadd.s32 %s152, 1
    %p156 = scmp.eq.s32.totalorder %s13, 1
    %p157 = scmp.ne.s32.totalorder %s152, %s154
    %p158 = scmp.eq.s32.totalorder %s13, 0
    %p159 = por %p157, %p158
    %p160 = scmp.ne.s32.totalorder %s152, %s154
    %p161 = scmp.eq.s32.totalorder %s18, 1
    %p162 = por %p160, %p161
    %p163 = scmp.ne.s32.totalorder %s154, %s155
    %p164 = scmp.eq.s32.totalorder %s18, 0
    %p165 = por %p163, %p164
    %p166 = scmp.ne.s32.totalorder %s154, %s155
    %p167 = scmp.eq.s32.totalorder %s19, 1
    %p168 = por %p166, %p167
    %p170 = scmp.ne.s32.totalorder %s155, %s169
    %p171 = scmp.eq.s32.totalorder %s19, 0
    %p172 = por %p170, %p171
    %s173 = ssub.s32 %s13, %s20
    %p174 = scmp.eq.s32.totalorder %s173, 0
    %s176 = sadd.s32 %s175, 1
    %s177 = scalar_select %p174, %s175, %s176
    %p180 = pneg %p174
    %p181 = scmp.eq.s32.totalorder %s13, 1
    %p182 = por %p180, %p181
    %p183 = scmp.ne.s32.totalorder %s175, %s178
    %p184 = scmp.eq.s32.totalorder %s13, 0
    %p185 = por %p183, %p184
    %p186 = scmp.ne.s32.totalorder %s175, %s178
    %p187 = scmp.eq.s32.totalorder %s18, 1
    %p188 = por %p186, %p187
    %p189 = scmp.ne.s32.totalorder %s178, %s179
    %p190 = scmp.eq.s32.totalorder %s18, 0
    %p191 = por %p189, %p190
    %p192 = scmp.ne.s32.totalorder %s178, %s179
    %p193 = scmp.eq.s32.totalorder %s19, 1
    %p194 = por %p192, %p193
    %p196 = scmp.ne.s32.totalorder %s179, %s195
    %p197 = scmp.eq.s32.totalorder %s19, 0
    %p198 = por %p196, %p197
    %p199 = scmp.le.s32.totalorder 1, %s13
    %p200 = scmp.lt.s32.totalorder %s13, 3
    %p201 = pnand %p199, %p200
    %p202 = pneg %p201
    // Predicated region
    $region9: #{block_forward.1} parent=5 // pred_check
      _
    $region10: #{block_forward.1} parent=5 // pred_check_branch
      %204 = sbr.rel (%p201) target = $region12
    $region11: #{block_forward.1} parent=5 // pred_region
      %s205 = ssub.s32 %s13, 1
      // Predicated region
      $region13: #{block_forward.1} parent=11 // pred_check
        %p206 = pneg %p60
      $region14: #{block_forward.1} parent=11 // pred_check_branch
        %208 = sbr.rel (%p206) target = $region16
      $region15: #{block_forward.1} parent=11 // pred_region
        _
      $region16: #{block_forward.1} parent=11 // pred_fallthru
        _
      // Predicated region
      $region17: #{block_forward.1} parent=11 // pred_check
        %p209 = pneg %p81
      $region18: #{block_forward.1} parent=11 // pred_check_branch
        %211 = sbr.rel (%p209) target = $region20
      $region19: #{block_forward.1} parent=11 // pred_region
        _
      $region20: #{block_forward.1} parent=11 // pred_fallthru
        _
      // Predicated region
      $region21: #{block_forward.1} parent=11 // pred_check
        %p212 = pneg %p102
      $region22: #{block_forward.1} parent=11 // pred_check_branch
        %214 = sbr.rel (%p212) target = $region24
      $region23: #{block_forward.1} parent=11 // pred_region
        _
      $region24: #{block_forward.1} parent=11 // pred_fallthru
        _
      // Predicated region
      $region25: #{block_forward.1} parent=11 // pred_check
        %p215 = pneg %p123
      $region26: #{block_forward.1} parent=11 // pred_check_branch
        %217 = sbr.rel (%p215) target = $region28
      $region27: #{block_forward.1} parent=11 // pred_region
        _
      $region28: #{block_forward.1} parent=11 // pred_fallthru
        _
      // Predicated region
      $region29: #{block_forward.1} parent=11 // pred_check
        %p218 = pneg %p144
      $region30: #{block_forward.1} parent=11 // pred_check_branch
        %220 = sbr.rel (%p218) target = $region32
      $region31: #{block_forward.1} parent=11 // pred_region
        _
      $region32: #{block_forward.1} parent=11 // pred_fallthru
        _
      // Predicated region
      $region33: #{block_forward.1} parent=11 // pred_check
        %p221 = pneg %p165
      $region34: #{block_forward.1} parent=11 // pred_check_branch
        %223 = sbr.rel (%p221) target = $region36
      $region35: #{block_forward.1} parent=11 // pred_region
        _
      $region36: #{block_forward.1} parent=11 // pred_fallthru
        _
    $region12: #{block_forward.1} parent=5 // pred_fallthru
      _
    %p224 = scmp.lt.s32.totalorder %s13, 2
    // Predicated region
    $region37: #{block_forward.1} parent=5 // pred_check
      %p225 = pneg %p224
    $region38: #{block_forward.1} parent=5 // pred_check_branch
      %227 = sbr.rel (%p225) target = $region40
    $region39: #{block_forward.1} parent=5 // pred_region
      // Predicated region
      $region41: #{block_forward.1} parent=39 // pred_check
        %p228 = pneg %p33
      $region42: #{block_forward.1} parent=39 // pred_check_branch
        %230 = sbr.rel (%p228) target = $region44
      $region43: #{block_forward.1} parent=39 // pred_region
        %s231 = smul.u32 2, %s13
        %p232 = scmp.lt.s32.totalorder %s231, 3
        %s233 = scalar_select %p232, %s231, 3
        %s234 = smul.addr %s233, 2
        %s235 = smul.addr %s234, 8
        %s236 = scalar_lea.vmem %s0, %s235
        %s237 = smul.u32 2, %s13
      $region44: #{block_forward.1} parent=39 // pred_fallthru
        _
    $region40: #{block_forward.1} parent=5 // pred_fallthru
      _
    %p238 = scmp.le.s32.totalorder 1, %s13
    %p239 = scmp.lt.s32.totalorder %s13, 3
    %p240 = pnand %p238, %p239
    %p241 = pneg %p240
    // Predicated region
    $region45: #{block_forward.1} parent=5 // pred_check
      _
    $region46: #{block_forward.1} parent=5 // pred_check_branch
      %243 = sbr.rel (%p240) target = $region48
    $region47: #{block_forward.1} parent=5 // pred_region
      %s244 = ssub.s32 %s13, 1
      %s245 = smul.u32 2, %s18
      %p246 = scmp.lt.s32.totalorder %s245, 3
      %s247 = scalar_select %p246, %s245, 3
      %s248 = smul.addr %s247, 2
      %s249 = smul.addr %s248, 8
      %s250 = scalar_lea.vmem %s0, %s249
      %p251 = pneg %p39
      %p252 = pneg %p36
      %p253 = pneg %p60
      %p254 = pneg %p57
      %p255 = pneg %p81
      %p256 = pneg %p78
      %p257 = pneg %p102
      %p258 = pneg %p99
      %p259 = pneg %p123
      %p260 = pneg %p120
      %p261 = pneg %p144
      %p262 = pneg %p141
      %p263 = pneg %p165
      %p264 = pneg %p162
      %p265 = pneg %p191
      %p266 = pneg %p188
      %s267 = smul.u32 2, %s18
      %p268 = scmp.lt.s32.totalorder %s267, 3
      %s269 = scalar_select %p268, %s267, 3
      %s270 = smul.addr %s269, 4
      %s271 = smul.addr %s270, 8
      %s272 = scalar_lea.vmem %s7, %s271
      %s273 = smul.u32 2, %s18
      %p274 = scmp.lt.s32.totalorder %s273, 3
      %s275 = scalar_select %p274, %s273, 3
      %s276 = smul.addr %s275, 2
      %s277 = smul.addr %s276, 8
      %s278 = scalar_lea.vmem %s0, %s277
      %s279 = smul.u32 2, %s18
      %s280 = smul.u32 2, %s18
      %p281 = scmp.lt.s32.totalorder %s280, 3
      %s282 = scalar_select %p281, %s280, 3
      %s283 = smul.addr %s282, 4
      %s284 = smul.addr %s283, 8
      %s285 = scalar_lea.vmem %s7, %s284
      %s286 = smul.u32 2, %s18
      %288 = vst [vmem:[#allocation2] sm:$0xff] 0.0
      %289 = vst [vmem:[#allocation2 + $0x18] sm:$0xff] 0.0
      %v290 = vld [vmem:[%s2] ss:$2 sm:$0x3]
      %s291 = scalar_lea.vmem %s2, 1
      %v292 = vld [vmem:[%s291] ss:$2 sm:$0x3]
      %v293 = vld [vmem:[%s278] sm:$0xff]
      %v294 = vld [vmem:[%s278 + $0x8] sm:$0xff]
      %295 = vst [vmem:[#allocation2 + $0x8] sm:$0xff] %v293
      %296 = vst [vmem:[#allocation2 + $0x10] sm:$0xff] %v294
      %v297 = vld [vmem:[#allocation2] sm:$0xff]
      %v298 = vld [vmem:[#allocation2 + $0x8] sm:$0xff]
      %v299 = vld [vmem:[#allocation2 + $0x10] sm:$0xff]
      %v301 = vlaneseq
      %v302 = vshrl.u32 %v301, 7
      %v303 = vsub.s32 0, %v302
      %v304 = vrot.slane %v290, %v303
      %v305 = vlaneseq
      %v306 = vshrl.u32 %v305, 7
      %v307 = vsub.s32 1, %v306
      %v308 = vrot.slane %v290, %v307
      %309 = vrot.lane.b32.xlu0 %v304, 111
      %v310 = vpop.permute.xlu0 %309
      %311 = vrot.lane.b32.xlu0 %v308, 111
      %v312 = vpop.permute.xlu0 %311
      %vm313 = vcmask 908288
      %v314 = vsel %vm313, %v310, %v312
      %v318 = vmul.f32 %v297, %v310
      %v319 = vmul.f32 %v298, %v314
      %v320 = vmul.f32 %v299, %v312
      %v321 = vpack.c.bf16 %v318, %v318
      %v322 = vpack.c.bf16 %v319, %v319
      %v323 = vpack.c.bf16 %v320, %v320
      %v327 = vunpack.c.l.b16 %v321
      %v328 = vunpack.c.l.b16 %v322
      %v329 = vunpack.c.l.b16 %v323
      %v330 = vpack.c.b16 %v328, %v327
      %v331 = vpack.c.b16 %v329, %v329
      %332 = vrot.lane.b32.xlu0 %v330, 17
      %v333 = vpop.permute.xlu0 %332
      %334 = vrot.lane.b32.xlu0 %v331, 17
      %v335 = vpop.permute.xlu0 %334
      %v336 = vrot.slane %v333, 4
      %v337 = vrot.slane %v335, 4
      %vm338 = vcmask 1043456
      %v339 = vsel %vm338, %v336, %v337
      %vm340 = vcmask 138240
      %v341 = vsel %vm340, %v333, %v339
      %343 = vst [vmem:[#allocation3] sm:$0xff] %v341
      %v344 = vld [vmem:[#allocation2] sm:$0xff]
      %v345 = vld [vmem:[#allocation2 + $0x8] sm:$0xff]
      %v346 = vld [vmem:[#allocation2 + $0x10] sm:$0xff]
      %v347 = vpack.c.bf16 %v344, %v344
      %v348 = vpack.c.bf16 %v345, %v345
      %v349 = vpack.c.bf16 %v346, %v346
      %v353 = vunpack.c.l.b16 %v347
      %v354 = vunpack.c.l.b16 %v348
      %v355 = vunpack.c.l.b16 %v349
      %v356 = vpack.c.b16 %v354, %v353
      %v357 = vpack.c.b16 %v355, %v355
      %358 = vrot.lane.b32.xlu0 %v356, 16
      %v359 = vpop.permute.xlu0 %358
      %360 = vrot.lane.b32.xlu0 %v357, 16
      %v361 = vpop.permute.xlu0 %360
      %v362 = vrot.slane %v359, 4
      %v363 = vrot.slane %v361, 4
      %v364 = vsel %vm338, %v362, %v363
      %vm365 = vcmask 130048
      %v366 = vsel %vm365, %v359, %v364
      %368 = vst [vmem:[#allocation3 + $0x10] sm:$0xff] %v366
      %v369 = vld [vmem:[#allocation2] sm:$0xff]
      %v370 = vld [vmem:[#allocation2 + $0x8] sm:$0xff]
      %v371 = vld [vmem:[#allocation2 + $0x10] sm:$0xff]
      %v373 = vlaneseq
      %v374 = vshrl.u32 %v373, 7
      %v375 = vsub.s32 0, %v374
      %v376 = vrot.slane %v292, %v375
      %v377 = vlaneseq
      %v378 = vshrl.u32 %v377, 7
      %v379 = vsub.s32 1, %v378
      %v380 = vrot.slane %v292, %v379
      %381 = vrot.lane.b32.xlu0 %v376, 113
      %v382 = vpop.permute.xlu0 %381
      %383 = vrot.lane.b32.xlu0 %v380, 113
      %v384 = vpop.permute.xlu0 %383
      %vm385 = vcmask 924672
      %v386 = vsel %vm385, %v382, %v384
      %v390 = vmul.f32 %v369, %v382
      %v391 = vmul.f32 %v370, %v386
      %v392 = vmul.f32 %v371, %v384
      %v393 = vpack.c.bf16 %v390, %v390
      %v394 = vpack.c.bf16 %v391, %v391
      %v395 = vpack.c.bf16 %v392, %v392
      %v399 = vunpack.c.l.b16 %v393
      %v400 = vunpack.c.l.b16 %v394
      %v401 = vunpack.c.l.b16 %v395
      %v402 = vpack.c.b16 %v400, %v399
      %v403 = vpack.c.b16 %v401, %v401
      %404 = vrot.lane.b32.xlu0 %v402, 15
      %v405 = vpop.permute.xlu0 %404
      %406 = vrot.lane.b32.xlu0 %v403, 15
      %v407 = vpop.permute.xlu0 %406
      %v408 = vrot.slane %v405, 4
      %v409 = vrot.slane %v407, 4
      %v410 = vsel %vm338, %v408, %v409
      %vm411 = vcmask 121856
      %v412 = vsel %vm411, %v405, %v410
      %414 = vst [vmem:[#allocation3 + $0x20] sm:$0xff] %v412
      %v415 = vld [vmem:[#allocation2] sm:$0xff]
      %v416 = vld [vmem:[#allocation2 + $0x8] sm:$0xff]
      %v417 = vld [vmem:[#allocation2 + $0x10] sm:$0xff]
      %418 = vrot.lane.b32.xlu0 %v304, 127
      %v419 = vpop.permute.xlu0 %418
      %420 = vrot.lane.b32.xlu0 %v308, 127
      %v421 = vpop.permute.xlu0 %420
      %vm422 = vcmask 1039360
      %v423 = vsel %vm422, %v419, %v421
      %v427 = vmul.f32 %v415, %v419
      %v428 = vmul.f32 %v416, %v423
      %v429 = vmul.f32 %v417, %v421
      %v430 = vpack.c.bf16 %v427, %v427
      %v431 = vpack.c.bf16 %v428, %v428
      %v432 = vpack.c.bf16 %v429, %v429
      %v436 = vunpack.c.l.b16 %v430
      %v437 = vunpack.c.l.b16 %v431
      %v438 = vunpack.c.l.b16 %v432
      %v439 = vpack.c.b16 %v437, %v436
      %v440 = vpack.c.b16 %v438, %v438
      %441 = vrot.lane.b32.xlu0 %v439, 1
      %v442 = vpop.permute.xlu0 %441
      %443 = vrot.lane.b32.xlu0 %v440, 1
      %v444 = vpop.permute.xlu0 %443
      %v445 = vrot.slane %v442, 4
      %v446 = vrot.slane %v444, 4
      %v447 = vsel %vm338, %v445, %v446
      %vm448 = vcmask 7168
      %v449 = vsel %vm448, %v442, %v447
      %451 = vst [vmem:[#allocation3 + $0x30] sm:$0xff] %v449
      %v452 = vld [vmem:[#allocation2 + $0x8] sm:$0xff]
      %v453 = vld [vmem:[#allocation2 + $0x10] sm:$0xff]
      %v454 = vpack.c.bf16 %v452, %v452
      %v455 = vpack.c.bf16 %v453, %v453
      %v458 = vunpack.c.l.b16 %v454
      %v459 = vunpack.c.l.b16 %v455
      %v460 = vpack.c.b16 %v459, %v458
      %462 = vst [vmem:[#allocation3 + $0x40] sm:$0xff] %v460
      %v463 = vld [vmem:[#allocation2 + $0x8] sm:$0xff]
      %v464 = vld [vmem:[#allocation2 + $0x10] sm:$0xff]
      %v465 = vld [vmem:[#allocation2 + $0x18] sm:$0xff]
      %466 = vrot.lane.b32.xlu0 %v376, 1
      %v467 = vpop.permute.xlu0 %466
      %468 = vrot.lane.b32.xlu0 %v380, 1
      %v469 = vpop.permute.xlu0 %468
      %vm470 = vcmask 7168
      %v471 = vsel %vm470, %v467, %v469
      %v475 = vmul.f32 %v463, %v467
      %v476 = vmul.f32 %v464, %v471
      %v477 = vmul.f32 %v465, %v469
      %v478 = vpack.c.bf16 %v475, %v475
      %v479 = vpack.c.bf16 %v476, %v476
      %v480 = vpack.c.bf16 %v477, %v477
      %v484 = vunpack.c.l.b16 %v478
      %v485 = vunpack.c.l.b16 %v479
      %v486 = vunpack.c.l.b16 %v480
      %v487 = vpack.c.b16 %v485, %v484
      %v488 = vpack.c.b16 %v486, %v486
      %489 = vrot.lane.b32.xlu0 %v487, 127
      %v490 = vpop.permute.xlu0 %489
      %491 = vrot.lane.b32.xlu0 %v488, 127
      %v492 = vpop.permute.xlu0 %491
      %v493 = vrot.slane %v490, 4
      %v494 = vrot.slane %v492, 4
      %v495 = vsel %vm338, %v493, %v494
      %vm496 = vcmask 1039360
      %v497 = vsel %vm496, %v490, %v495
      %499 = vst [vmem:[#allocation3 + $0x50] sm:$0xff] %v497
      %v500 = vld [vmem:[#allocation2 + $0x8] sm:$0xff]
      %v501 = vld [vmem:[#allocation2 + $0x10] sm:$0xff]
      %v502 = vld [vmem:[#allocation2 + $0x18] sm:$0xff]
      %503 = vrot.lane.b32.xlu0 %v304, 15
      %v504 = vpop.permute.xlu0 %503
      %505 = vrot.lane.b32.xlu0 %v308, 15
      %v506 = vpop.permute.xlu0 %505
      %vm507 = vcmask 121856
      %v508 = vsel %vm507, %v504, %v506
      %v512 = vmul.f32 %v500, %v504
      %v513 = vmul.f32 %v501, %v508
      %v514 = vmul.f32 %v502, %v506
      %v515 = vpack.c.bf16 %v512, %v512
      %v516 = vpack.c.bf16 %v513, %v513
      %v517 = vpack.c.bf16 %v514, %v514
      %v521 = vunpack.c.l.b16 %v515
      %v522 = vunpack.c.l.b16 %v516
      %v523 = vunpack.c.l.b16 %v517
      %v524 = vpack.c.b16 %v522, %v521
      %v525 = vpack.c.b16 %v523, %v523
      %526 = vrot.lane.b32.xlu0 %v524, 113
      %v527 = vpop.permute.xlu0 %526
      %528 = vrot.lane.b32.xlu0 %v525, 113
      %v529 = vpop.permute.xlu0 %528
      %v530 = vrot.slane %v527, 4
      %v531 = vrot.slane %v529, 4
      %v532 = vsel %vm338, %v530, %v531
      %vm533 = vcmask 924672
      %v534 = vsel %vm533, %v527, %v532
      %536 = vst [vmem:[#allocation3 + $0x60] sm:$0xff] %v534
      %v537 = vld [vmem:[#allocation2 + $0x8] sm:$0xff]
      %v538 = vld [vmem:[#allocation2 + $0x10] sm:$0xff]
      %v539 = vld [vmem:[#allocation2 + $0x18] sm:$0xff]
      %v540 = vpack.c.bf16 %v537, %v537
      %v541 = vpack.c.bf16 %v538, %v538
      %v542 = vpack.c.bf16 %v539, %v539
      %v546 = vunpack.c.l.b16 %v540
      %v547 = vunpack.c.l.b16 %v541
      %v548 = vunpack.c.l.b16 %v542
      %v549 = vpack.c.b16 %v547, %v546
      %v550 = vpack.c.b16 %v548, %v548
      %551 = vrot.lane.b32.xlu0 %v549, 112
      %v552 = vpop.permute.xlu0 %551
      %553 = vrot.lane.b32.xlu0 %v550, 112
      %v554 = vpop.permute.xlu0 %553
      %v555 = vrot.slane %v552, 4
      %v556 = vrot.slane %v554, 4
      %v557 = vsel %vm338, %v555, %v556
      %vm558 = vcmask 916480
      %v559 = vsel %vm558, %v552, %v557
      %561 = vst [vmem:[#allocation3 + $0x70] sm:$0xff] %v559
      %v562 = vld [vmem:[#allocation2 + $0x8] sm:$0xff]
      %v563 = vld [vmem:[#allocation2 + $0x10] sm:$0xff]
      %v564 = vld [vmem:[#allocation2 + $0x18] sm:$0xff]
      %565 = vrot.lane.b32.xlu0 %v376, 17
      %v566 = vpop.permute.xlu0 %565
      %567 = vrot.lane.b32.xlu0 %v380, 17
      %v568 = vpop.permute.xlu0 %567
      %vm569 = vcmask 138240
      %v570 = vsel %vm569, %v566, %v568
      %v574 = vmul.f32 %v562, %v566
      %v575 = vmul.f32 %v563, %v570
      %v576 = vmul.f32 %v564, %v568
      %v577 = vpack.c.bf16 %v574, %v574
      %v578 = vpack.c.bf16 %v575, %v575
      %v579 = vpack.c.bf16 %v576, %v576
      %v583 = vunpack.c.l.b16 %v577
      %v584 = vunpack.c.l.b16 %v578
      %v585 = vunpack.c.l.b16 %v579
      %v586 = vpack.c.b16 %v584, %v583
      %v587 = vpack.c.b16 %v585, %v585
      %588 = vrot.lane.b32.xlu0 %v586, 111
      %v589 = vpop.permute.xlu0 %588
      %590 = vrot.lane.b32.xlu0 %v587, 111
      %v591 = vpop.permute.xlu0 %590
      %v592 = vrot.slane %v589, 4
      %v593 = vrot.slane %v591, 4
      %v594 = vsel %vm338, %v592, %v593
      %vm595 = vcmask 908288
      %v596 = vsel %vm595, %v589, %v594
      %598 = vst [vmem:[#allocation3 + $0x80] sm:$0xff] %v596
      %s599 = scalar_lea.vmem %s278, 16
      %v600 = vld [vmem:[%s599] sm:$0xff]
      %v601 = vld [vmem:[%s599 + $0x8] sm:$0xff]
      %602 = vst [vmem:[#allocation2 + $0x8] sm:$0xff] %v600
      %603 = vst [vmem:[#allocation2 + $0x10] sm:$0xff] %v601
      %v604 = vld [vmem:[#allocation2] sm:$0xff]
      %v605 = vld [vmem:[#allocation2 + $0x8] sm:$0xff]
      %v606 = vld [vmem:[#allocation2 + $0x10] sm:$0xff]
      %v607 = vmul.f32 %v604, %v310
      %v608 = vmul.f32 %v605, %v314
      %v609 = vmul.f32 %v606, %v312
      %v610 = vpack.c.bf16 %v607, %v607
      %v611 = vpack.c.bf16 %v608, %v608
      %v612 = vpack.c.bf16 %v609, %v609
      %v616 = vunpack.c.l.b16 %v610
      %v617 = vunpack.c.l.b16 %v611
      %v618 = vunpack.c.l.b16 %v612
      %v619 = vpack.c.b16 %v617, %v616
      %v620 = vpack.c.b16 %v618, %v618
      %621 = vrot.lane.b32.xlu0 %v619, 17
      %v622 = vpop.permute.xlu0 %621
      %623 = vrot.lane.b32.xlu0 %v620, 17
      %v624 = vpop.permute.xlu0 %623
      %v625 = vrot.slane %v622, 4
      %v626 = vrot.slane %v624, 4
      %v627 = vsel %vm338, %v625, %v626
      %v628 = vsel %vm340, %v622, %v627
      %630 = vst [vmem:[#allocation3 + $0x8] sm:$0xff] %v628
      %v631 = vld [vmem:[#allocation2] sm:$0xff]
      %v632 = vld [vmem:[#allocation2 + $0x8] sm:$0xff]
      %v633 = vld [vmem:[#allocation2 + $0x10] sm:$0xff]
      %v634 = vpack.c.bf16 %v631, %v631
      %v635 = vpack.c.bf16 %v632, %v632
      %v636 = vpack.c.bf16 %v633, %v633
      %v640 = vunpack.c.l.b16 %v634
      %v641 = vunpack.c.l.b16 %v635
      %v642 = vunpack.c.l.b16 %v636
      %v643 = vpack.c.b16 %v641, %v640
      %v644 = vpack.c.b16 %v642, %v642
      %645 = vrot.lane.b32.xlu0 %v643, 16
      %v646 = vpop.permute.xlu0 %645
      %647 = vrot.lane.b32.xlu0 %v644, 16
      %v648 = vpop.permute.xlu0 %647
      %v649 = vrot.slane %v646, 4
      %v650 = vrot.slane %v648, 4
      %v651 = vsel %vm338, %v649, %v650
      %v652 = vsel %vm365, %v646, %v651
      %654 = vst [vmem:[#allocation3 + $0x18] sm:$0xff] %v652
      %v655 = vld [vmem:[#allocation2] sm:$0xff]
      %v656 = vld [vmem:[#allocation2 + $0x8] sm:$0xff]
      %v657 = vld [vmem:[#allocation2 + $0x10] sm:$0xff]
      %v658 = vmul.f32 %v655, %v382
      %v659 = vmul.f32 %v656, %v386
      %v660 = vmul.f32 %v657, %v384
      %v661 = vpack.c.bf16 %v658, %v658
      %v662 = vpack.c.bf16 %v659, %v659
      %v663 = vpack.c.bf16 %v660, %v660
      %v667 = vunpack.c.l.b16 %v661
      %v668 = vunpack.c.l.b16 %v662
      %v669 = vunpack.c.l.b16 %v663
      %v670 = vpack.c.b16 %v668, %v667
      %v671 = vpack.c.b16 %v669, %v669
      %672 = vrot.lane.b32.xlu0 %v670, 15
      %v673 = vpop.permute.xlu0 %672
      %674 = vrot.lane.b32.xlu0 %v671, 15
      %v675 = vpop.permute.xlu0 %674
      %v676 = vrot.slane %v673, 4
      %v677 = vrot.slane %v675, 4
      %v678 = vsel %vm338, %v676, %v677
      %v679 = vsel %vm411, %v673, %v678
      %681 = vst [vmem:[#allocation3 + $0x28] sm:$0xff] %v679
      %v682 = vld [vmem:[#allocation2] sm:$0xff]
      %v683 = vld [vmem:[#allocation2 + $0x8] sm:$0xff]
      %v684 = vld [vmem:[#allocation2 + $0x10] sm:$0xff]
      %v685 = vmul.f32 %v682, %v419
      %v686 = vmul.f32 %v683, %v423
      %v687 = vmul.f32 %v684, %v421
      %v688 = vpack.c.bf16 %v685, %v685
      %v689 = vpack.c.bf16 %v686, %v686
      %v690 = vpack.c.bf16 %v687, %v687
      %v694 = vunpack.c.l.b16 %v688
      %v695 = vunpack.c.l.b16 %v689
      %v696 = vunpack.c.l.b16 %v690
      %v697 = vpack.c.b16 %v695, %v694
      %v698 = vpack.c.b16 %v696, %v696
      %699 = vrot.lane.b32.xlu0 %v697, 1
      %v700 = vpop.permute.xlu0 %699
      %701 = vrot.lane.b32.xlu0 %v698, 1
      %v702 = vpop.permute.xlu0 %701
      %v703 = vrot.slane %v700, 4
      %v704 = vrot.slane %v702, 4
      %v705 = vsel %vm338, %v703, %v704
      %v706 = vsel %vm448, %v700, %v705
      %708 = vst [vmem:[#allocation3 + $0x38] sm:$0xff] %v706
      %v709 = vld [vmem:[#allocation2 + $0x8] sm:$0xff]
      %v710 = vld [vmem:[#allocation2 + $0x10] sm:$0xff]
      %v711 = vpack.c.bf16 %v709, %v709
      %v712 = vpack.c.bf16 %v710, %v710
      %v715 = vunpack.c.l.b16 %v711
      %v716 = vunpack.c.l.b16 %v712
      %v717 = vpack.c.b16 %v716, %v715
      %719 = vst [vmem:[#allocation3 + $0x48] sm:$0xff] %v717
      %v720 = vld [vmem:[#allocation2 + $0x8] sm:$0xff]
      %v721 = vld [vmem:[#allocation2 + $0x10] sm:$0xff]
      %v722 = vld [vmem:[#allocation2 + $0x18] sm:$0xff]
      %v723 = vmul.f32 %v720, %v467
      %v724 = vmul.f32 %v721, %v471
      %v725 = vmul.f32 %v722, %v469
      %v726 = vpack.c.bf16 %v723, %v723
      %v727 = vpack.c.bf16 %v724, %v724
      %v728 = vpack.c.bf16 %v725, %v725
      %v732 = vunpack.c.l.b16 %v726
      %v733 = vunpack.c.l.b16 %v727
      %v734 = vunpack.c.l.b16 %v728
      %v735 = vpack.c.b16 %v733, %v732
      %v736 = vpack.c.b16 %v734, %v734
      %737 = vrot.lane.b32.xlu0 %v735, 127
      %v738 = vpop.permute.xlu0 %737
      %739 = vrot.lane.b32.xlu0 %v736, 127
      %v740 = vpop.permute.xlu0 %739
      %v741 = vrot.slane %v738, 4
      %v742 = vrot.slane %v740, 4
      %v743 = vsel %vm338, %v741, %v742
      %v744 = vsel %vm496, %v738, %v743
      %746 = vst [vmem:[#allocation3 + $0x58] sm:$0xff] %v744
      %v747 = vld [vmem:[#allocation2 + $0x8] sm:$0xff]
      %v748 = vld [vmem:[#allocation2 + $0x10] sm:$0xff]
      %v749 = vld [vmem:[#allocation2 + $0x18] sm:$0xff]
      %v750 = vmul.f32 %v747, %v504
      %v751 = vmul.f32 %v748, %v508
      %v752 = vmul.f32 %v749, %v506
      %v753 = vpack.c.bf16 %v750, %v750
      %v754 = vpack.c.bf16 %v751, %v751
      %v755 = vpack.c.bf16 %v752, %v752
      %v759 = vunpack.c.l.b16 %v753
      %v760 = vunpack.c.l.b16 %v754
      %v761 = vunpack.c.l.b16 %v755
      %v762 = vpack.c.b16 %v760, %v759
      %v763 = vpack.c.b16 %v761, %v761
      %764 = vrot.lane.b32.xlu0 %v762, 113
      %v765 = vpop.permute.xlu0 %764
      %766 = vrot.lane.b32.xlu0 %v763, 113
      %v767 = vpop.permute.xlu0 %766
      %v768 = vrot.slane %v765, 4
      %v769 = vrot.slane %v767, 4
      %v770 = vsel %vm338, %v768, %v769
      %v771 = vsel %vm533, %v765, %v770
      %773 = vst [vmem:[#allocation3 + $0x68] sm:$0xff] %v771
      %v774 = vld [vmem:[#allocation2 + $0x8] sm:$0xff]
      %v775 = vld [vmem:[#allocation2 + $0x10] sm:$0xff]
      %v776 = vld [vmem:[#allocation2 + $0x18] sm:$0xff]
      %v777 = vpack.c.bf16 %v774, %v774
      %v778 = vpack.c.bf16 %v775, %v775
      %v779 = vpack.c.bf16 %v776, %v776
      %v783 = vunpack.c.l.b16 %v777
      %v784 = vunpack.c.l.b16 %v778
      %v785 = vunpack.c.l.b16 %v779
      %v786 = vpack.c.b16 %v784, %v783
      %v787 = vpack.c.b16 %v785, %v785
      %788 = vrot.lane.b32.xlu0 %v786, 112
      %v789 = vpop.permute.xlu0 %788
      %790 = vrot.lane.b32.xlu0 %v787, 112
      %v791 = vpop.permute.xlu0 %790
      %v792 = vrot.slane %v789, 4
      %v793 = vrot.slane %v791, 4
      %v794 = vsel %vm338, %v792, %v793
      %v795 = vsel %vm558, %v789, %v794
      %797 = vst [vmem:[#allocation3 + $0x78] sm:$0xff] %v795
      %v798 = vld [vmem:[#allocation2 + $0x8] sm:$0xff]
      %v799 = vld [vmem:[#allocation2 + $0x10] sm:$0xff]
      %v800 = vld [vmem:[#allocation2 + $0x18] sm:$0xff]
      %v801 = vmul.f32 %v798, %v566
      %v802 = vmul.f32 %v799, %v570
      %v803 = vmul.f32 %v800, %v568
      %v804 = vpack.c.bf16 %v801, %v801
      %v805 = vpack.c.bf16 %v802, %v802
      %v806 = vpack.c.bf16 %v803, %v803
      %v810 = vunpack.c.l.b16 %v804
      %v811 = vunpack.c.l.b16 %v805
      %v812 = vunpack.c.l.b16 %v806
      %v813 = vpack.c.b16 %v811, %v810
      %v814 = vpack.c.b16 %v812, %v812
      %815 = vrot.lane.b32.xlu0 %v813, 111
      %v816 = vpop.permute.xlu0 %815
      %817 = vrot.lane.b32.xlu0 %v814, 111
      %v818 = vpop.permute.xlu0 %817
      %v819 = vrot.slane %v816, 4
      %v820 = vrot.slane %v818, 4
      %v821 = vsel %vm338, %v819, %v820
      %v822 = vsel %vm595, %v816, %v821
      %824 = vst [vmem:[#allocation3 + $0x88] sm:$0xff] %v822
      %v825 = vld [vmem:[%s1] sm:$0xf]
      %v826 = vld [vmem:[%s1 + $0x4] sm:$0xf]
      %v827 = vld [vmem:[#allocation3] sm:$0xff]
      %v828 = vld [vmem:[#allocation3 + $0x8] sm:$0xff]
      %v829 = vld [vmem:[#allocation3 + $0x10] sm:$0xff]
      %v830 = vld [vmem:[#allocation3 + $0x18] sm:$0xff]
      %v831 = vld [vmem:[#allocation3 + $0x20] sm:$0xff]
      %v832 = vld [vmem:[#allocation3 + $0x28] sm:$0xff]
      %v833 = vld [vmem:[#allocation3 + $0x30] sm:$0xff]
      %v834 = vld [vmem:[#allocation3 + $0x38] sm:$0xff]
      %v835 = vld [vmem:[#allocation3 + $0x40] sm:$0xff]
      %v836 = vld [vmem:[#allocation3 + $0x48] sm:$0xff]
      %v837 = vld [vmem:[#allocation3 + $0x50] sm:$0xff]
      %v838 = vld [vmem:[#allocation3 + $0x58] sm:$0xff]
      %v839 = vld [vmem:[#allocation3 + $0x60] sm:$0xff]
      %v840 = vld [vmem:[#allocation3 + $0x68] sm:$0xff]
      %v841 = vld [vmem:[#allocation3 + $0x70] sm:$0xff]
      %v842 = vld [vmem:[#allocation3 + $0x78] sm:$0xff]
      %v843 = vld [vmem:[#allocation3 + $0x80] sm:$0xff]
      %v844 = vld [vmem:[#allocation3 + $0x88] sm:$0xff]
      %v845 = vld [vmem:[%s3] sm:$0xff]
      %v846 = vld [vmem:[%s3 + $0x8] sm:$0xff]
      %848 = vset.pattern.permute.xlu0 0
      %849 = vperm.xlu0 %848, %v845
      %v850 = vpop.permute.xlu0 %849
      %853 = vset.pattern.permute.xlu0 0
      %854 = vperm.xlu0 %853, %v846
      %v855 = vpop.permute.xlu0 %854
      %v859 = vunpack.c.l.b16 %v825
      %v860 = vunpack.c.l.b16 %v826
      %v861 = vpack.c.b16 %v860, %v859
      %v880 = vunpack.c.l.b16 %v827
      %v881 = vunpack.c.h.b16 %v827
      %v882 = vunpack.c.l.b16 %v828
      %v883 = vunpack.c.h.b16 %v828
      %v884 = vunpack.c.l.b16 %v829
      %v885 = vunpack.c.h.b16 %v829
      %v886 = vunpack.c.l.b16 %v830
      %v887 = vunpack.c.h.b16 %v830
      %v888 = vunpack.c.l.b16 %v831
      %v889 = vunpack.c.h.b16 %v831
      %v890 = vunpack.c.l.b16 %v832
      %v891 = vunpack.c.h.b16 %v832
      %v892 = vunpack.c.l.b16 %v833
      %v893 = vunpack.c.h.b16 %v833
      %v894 = vunpack.c.l.b16 %v834
      %v895 = vunpack.c.h.b16 %v834
      %v896 = vunpack.c.l.b16 %v835
      %v897 = vunpack.c.h.b16 %v835
      %v898 = vunpack.c.l.b16 %v836
      %v899 = vunpack.c.h.b16 %v836
      %v900 = vunpack.c.l.b16 %v837
      %v901 = vunpack.c.h.b16 %v837
      %v902 = vunpack.c.l.b16 %v838
      %v903 = vunpack.c.h.b16 %v838
      %v904 = vunpack.c.l.b16 %v839
      %v905 = vunpack.c.h.b16 %v839
      %v906 = vunpack.c.l.b16 %v840
      %v907 = vunpack.c.h.b16 %v840
      %v908 = vunpack.c.l.b16 %v841
      %v909 = vunpack.c.h.b16 %v841
      %v910 = vunpack.c.l.b16 %v842
      %v911 = vunpack.c.h.b16 %v842
      %v912 = vunpack.c.l.b16 %v843
      %v913 = vunpack.c.h.b16 %v843
      %v914 = vunpack.c.l.b16 %v844
      %v915 = vunpack.c.h.b16 %v844
      %v916 = vpack.c.b16 %v884, %v880
      %v917 = vpack.c.b16 %v885, %v881
      %v918 = vpack.c.b16 %v886, %v882
      %v919 = vpack.c.b16 %v887, %v883
      %v920 = vpack.c.b16 %v892, %v888
      %v921 = vpack.c.b16 %v893, %v889
      %v922 = vpack.c.b16 %v894, %v890
      %v923 = vpack.c.b16 %v895, %v891
      %v924 = vpack.c.b16 %v900, %v896
      %v925 = vpack.c.b16 %v901, %v897
      %v926 = vpack.c.b16 %v902, %v898
      %v927 = vpack.c.b16 %v903, %v899
      %v928 = vpack.c.b16 %v908, %v904
      %v929 = vpack.c.b16 %v909, %v905
      %v930 = vpack.c.b16 %v910, %v906
      %v931 = vpack.c.b16 %v911, %v907
      %v932 = vpack.c.b16 %v912, %v912
      %v933 = vpack.c.b16 %v913, %v913
      %v934 = vpack.c.b16 %v914, %v914
      %v935 = vpack.c.b16 %v915, %v915
      %vm952 = vcmask 588800
      %v954 = vsel %vm952, %v861, 0
      %vm956 = vcmask 1043456
      %v958 = vsel %vm956, %v932, 0
      %v961 = vsel %vm956, %v933, 0
      %v964 = vsel %vm956, %v934, 0
      %v967 = vsel %vm956, %v935, 0
      %969 = vmatprep.subr.bf16.mxu0 %v917
      %970 = vmatpush1.bf16.msra.mxu0 %v916
      %971 = vmatprep.subr.bf16.mxu0 %v921
      %972 = vmatpush1.bf16.msra.mxu0 %v920
      %973 = vmatprep.subr.bf16.mxu0 %v925
      %974 = vmatpush1.bf16.msra.mxu0 %v924
      %975 = vmatprep.subr.bf16.mxu0 %v929
      %976 = vmatpush1.bf16.msra.mxu0 %v928
      %977 = vmatprep.subr.bf16.mxu0 %v961
      %978 = vmatpush1.bf16.msra.mxu0 %v958
      %979 = vmatprep.subr.bf16.mxu0 0
      %980 = vmatpush1.bf16.msra.mxu0 0
      %981 = vmatprep.subr.bf16.mxu0 0
      %982 = vmatpush1.bf16.msra.mxu0 0
      %983 = vmatprep.subr.bf16.mxu0 0
      %984 = vmatpush1.bf16.msra.mxu0 0
      %985 = vmatprep.subr.bf16.mxu0 0
      %986 = vmatpush1.bf16.msra.mxu0 0
      %987 = vmatprep.subr.bf16.mxu0 0
      %988 = vmatpush1.bf16.msra.mxu0 0
      %989 = vmatprep.subr.bf16.mxu0 0
      %990 = vmatpush1.bf16.msra.mxu0 0
      %991 = vmatprep.subr.bf16.mxu0 0
      %992 = vmatpush1.bf16.msra.mxu0 0
      %993 = vmatprep.subr.bf16.mxu0 0
      %994 = vmatpush1.bf16.msra.mxu0 0
      %995 = vmatprep.subr.bf16.mxu0 0
      %996 = vmatpush1.bf16.msra.mxu0 0
      %997 = vmatprep.subr.bf16.mxu0 0
      %998 = vmatpush1.bf16.msra.mxu0 0
      %999 = vmatprep.subr.bf16.mxu0 0
      %1000 = vmatpush1.bf16.msra.mxu0 0
      %1001 = vmatprep.mubr.bf16.mxu0 0
      %1002 = vmatmul.mubr.bf16.gmra.mrb[0].mxu0 %v954
      %v1003 = vpop.f32.mrb[0].mxu0
      %v1004 = vadd.f32 %v850, %v1003
      %v1005 = vpop.f32.mrb[0].mxu0
      %v1006 = vadd.f32 %v850, %v1005
      %v1007 = vpop.f32.mrb[0].mxu0
      %v1008 = vadd.f32 %v855, %v1007
      %v1009 = vpop.f32.mrb[0].mxu0
      %v1010 = vadd.f32 %v855, %v1009
      %1011 = vdwg.mxu0
      %1012 = vmatprep.subr.bf16.mxu0 %v919
      %1013 = vmatpush1.bf16.msra.mxu0 %v918
      %1014 = vmatprep.subr.bf16.mxu0 %v923
      %1015 = vmatpush1.bf16.msra.mxu0 %v922
      %1016 = vmatprep.subr.bf16.mxu0 %v927
      %1017 = vmatpush1.bf16.msra.mxu0 %v926
      %1018 = vmatprep.subr.bf16.mxu0 %v931
      %1019 = vmatpush1.bf16.msra.mxu0 %v930
      %1020 = vmatprep.subr.bf16.mxu0 %v967
      %1021 = vmatpush1.bf16.msra.mxu0 %v964
      %1022 = vmatprep.subr.bf16.mxu0 0
      %1023 = vmatpush1.bf16.msra.mxu0 0
      %1024 = vmatprep.subr.bf16.mxu0 0
      %1025 = vmatpush1.bf16.msra.mxu0 0
      %1026 = vmatprep.subr.bf16.mxu0 0
      %1027 = vmatpush1.bf16.msra.mxu0 0
      %1028 = vmatprep.subr.bf16.mxu0 0
      %1029 = vmatpush1.bf16.msra.mxu0 0
      %1030 = vmatprep.subr.bf16.mxu0 0
      %1031 = vmatpush1.bf16.msra.mxu0 0
      %1032 = vmatprep.subr.bf16.mxu0 0
      %1033 = vmatpush1.bf16.msra.mxu0 0
      %1034 = vmatprep.subr.bf16.mxu0 0
      %1035 = vmatpush1.bf16.msra.mxu0 0
      %1036 = vmatprep.subr.bf16.mxu0 0
      %1037 = vmatpush1.bf16.msra.mxu0 0
      %1038 = vmatprep.subr.bf16.mxu0 0
      %1039 = vmatpush1.bf16.msra.mxu0 0
      %1040 = vmatprep.subr.bf16.mxu0 0
      %1041 = vmatpush1.bf16.msra.mxu0 0
      %1042 = vmatprep.subr.bf16.mxu0 0
      %1043 = vmatpush1.bf16.msra.mxu0 0
      %1044 = vmatprep.mubr.bf16.mxu0 0
      %1045 = vmatmul.mubr.bf16.gmra.mrb[0].mxu0 %v954
      %v1046 = vpop.f32.mrb[0].mxu0
      %v1047 = vadd.f32 %v850, %v1046
      %v1048 = vpop.f32.mrb[0].mxu0
      %v1049 = vadd.f32 %v850, %v1048
      %v1050 = vpop.f32.mrb[0].mxu0
      %v1051 = vadd.f32 %v855, %v1050
      %v1052 = vpop.f32.mrb[0].mxu0
      %v1053 = vadd.f32 %v855, %v1052
      %1054 = vdwg.mxu0
      %v1055 = vld [vmem:[%s6] sm:$0xff]
      %v1056 = vld [vmem:[%s6 + $0x8] sm:$0xff]
      %v1057 = vld [vmem:[%s4] sm:$0xff]
      %v1058 = vld [vmem:[%s4 + $0x8] sm:$0xff]
      %v1059 = vld [vmem:[%s5] sm:$0xff]
      %v1060 = vld [vmem:[%s5 + $0x8] sm:$0xff]
      %v1061 = vadd.f32 %v1004, %v1006
      %1062 = vadd.xlane.f32.xlu0 %v1061
      %v1063 = vpop.xlane.xlu0 %1062
      %v1064 = vadd.f32 %v1008, %v1010
      %1065 = vadd.xlane.f32.xlu0 %v1064
      %v1066 = vpop.xlane.xlu0 %1065
      %v1067 = vmul.f32 %v1055, %v1063
      %v1068 = vmul.f32 %v1056, %v1066
      %vm1069 = vcmask 64512
      %v1070 = vsel %vm1069, %v1067, 0.0
      %v1071 = vsel %vm1069, %v1068, 0.0
      %v1072 = vadd.f32 %v1070, %v1071
      %v1073 = vrot.slane %v1072, 4
      %v1074 = vadd.f32 %v1072, %v1073
      %v1075 = vrot.slane %v1074, 2
      %v1076 = vadd.f32 %v1074, %v1075
      %v1077 = vrot.slane %v1076, 1
      %v1078 = vadd.f32 %v1076, %v1077
      %v1079 = vrcp.pop 512.0
      %v1080 = vmul.f32 %v1078, %v1079
      %v1081 = vmul.f32 %v1055, %v1080
      %v1082 = vmul.f32 %v1056, %v1080
      %v1083 = vsel %vm1069, %v1081, 0.0
      %1084 = vadd.xlane.f32.xlu0 %v1083
      %v1085 = vpop.xlane.xlu0 %1084
      %v1086 = vsel %vm1069, %v1082, 0.0
      %1087 = vadd.xlane.f32.xlu0 %v1086
      %v1088 = vpop.xlane.xlu0 %1087
      %v1089 = vsub.f32 %v1004, %v1085
      %v1090 = vsub.f32 %v1006, %v1085
      %v1091 = vsub.f32 %v1008, %v1088
      %v1092 = vsub.f32 %v1010, %v1088
      %v1093 = vmul.f32 %v1089, %v1089
      %v1094 = vmul.f32 %v1090, %v1090
      %v1095 = vmul.f32 %v1091, %v1091
      %v1096 = vmul.f32 %v1092, %v1092
      %v1097 = vadd.f32 %v1093, %v1094
      %1098 = vadd.xlane.f32.xlu0 %v1097
      %v1099 = vpop.xlane.xlu0 %1098
      %v1100 = vadd.f32 %v1095, %v1096
      %1101 = vadd.xlane.f32.xlu0 %v1100
      %v1102 = vpop.xlane.xlu0 %1101
      %v1103 = vmul.f32 %v1055, %v1099
      %v1104 = vmul.f32 %v1056, %v1102
      %v1105 = vsel %vm1069, %v1103, 0.0
      %v1106 = vsel %vm1069, %v1104, 0.0
      %v1107 = vadd.f32 %v1105, %v1106
      %v1108 = vrot.slane %v1107, 4
      %v1109 = vadd.f32 %v1107, %v1108
      %v1110 = vrot.slane %v1109, 2
      %v1111 = vadd.f32 %v1109, %v1110
      %v1112 = vrot.slane %v1111, 1
      %v1113 = vadd.f32 %v1111, %v1112
      %v1114 = vmul.f32 %v1113, %v1079
      %v1115 = vadd.f32 %v1114, 1e-05
      %v1116 = vrsqrt.pop %v1115
      %v1117 = vmul.f32 %v1055, %v1116
      %v1118 = vmul.f32 %v1056, %v1116
      %v1119 = vsel %vm1069, %v1117, 0.0
      %1120 = vadd.xlane.f32.xlu0 %v1119
      %v1121 = vpop.xlane.xlu0 %1120
      %v1122 = vsel %vm1069, %v1118, 0.0
      %1123 = vadd.xlane.f32.xlu0 %v1122
      %v1124 = vpop.xlane.xlu0 %1123
      %v1125 = vmul.f32 %v1121, %v1057
      %v1126 = vmul.f32 %v1124, %v1058
      %1128 = vset.pattern.permute.xlu0 0
      %1129 = vperm.xlu0 %1128, %v1125
      %v1130 = vpop.permute.xlu0 %1129
      %1133 = vset.pattern.permute.xlu0 0
      %1134 = vperm.xlu0 %1133, %v1126
      %v1135 = vpop.permute.xlu0 %1134
      %v1137 = vmul.f32 %v1089, %v1130
      %v1138 = vmul.f32 %v1090, %v1130
      %v1139 = vmul.f32 %v1091, %v1135
      %v1140 = vmul.f32 %v1092, %v1135
      %1142 = vset.pattern.permute.xlu0 0
      %1143 = vperm.xlu0 %1142, %v1059
      %v1144 = vpop.permute.xlu0 %1143
      %1147 = vset.pattern.permute.xlu0 0
      %1148 = vperm.xlu0 %1147, %v1060
      %v1149 = vpop.permute.xlu0 %1148
      %v1151 = vadd.f32 %v1137, %v1144
      %v1152 = vadd.f32 %v1138, %v1144
      %v1153 = vadd.f32 %v1139, %v1149
      %v1154 = vadd.f32 %v1140, %v1149
      %v1155 = vxor.u32 %v1151, 2147483648
      %v1156 = vxor.u32 %v1152, 2147483648
      %v1157 = vxor.u32 %v1153, 2147483648
      %v1158 = vxor.u32 %v1154, 2147483648
      %v1159 = vmul.f32 %v1155, 1.442695
      %v1160 = vpow.pop %v1159
      %v1161 = vmul.f32 %v1156, 1.442695
      %v1162 = vpow.pop %v1161
      %v1163 = vmul.f32 %v1157, 1.442695
      %v1164 = vpow.pop %v1163
      %v1165 = vmul.f32 %v1158, 1.442695
      %v1166 = vpow.pop %v1165
      %v1167 = vadd.f32 %v1160, 1.0
      %v1168 = vadd.f32 %v1162, 1.0
      %v1169 = vadd.f32 %v1164, 1.0
      %v1170 = vadd.f32 %v1166, 1.0
      %v1171 = vrcp.pop %v1167
      %v1172 = vmul.f32 1.0, %v1171
      %v1173 = vrcp.pop %v1168
      %v1174 = vmul.f32 1.0, %v1173
      %v1175 = vrcp.pop %v1169
      %v1176 = vmul.f32 1.0, %v1175
      %v1177 = vrcp.pop %v1170
      %v1178 = vmul.f32 1.0, %v1177
      %v1179 = vmul.f32 %v1151, %v1172
      %v1180 = vmul.f32 %v1152, %v1174
      %v1181 = vmul.f32 %v1153, %v1176
      %v1182 = vmul.f32 %v1154, %v1178
      %1183 = vst [vmem:[%s285] sm:$0xff] %v1179
      %1184 = vst [vmem:[%s285 + $0x8] sm:$0xff] %v1180
      %1185 = vst [vmem:[%s285 + $0x10] sm:$0xff] %v1181
      %1186 = vst [vmem:[%s285 + $0x18] sm:$0xff] %v1182
      %v1187 = vadd.f32 %v1047, %v1049
      %1188 = vadd.xlane.f32.xlu0 %v1187
      %v1189 = vpop.xlane.xlu0 %1188
      %v1190 = vadd.f32 %v1051, %v1053
      %1191 = vadd.xlane.f32.xlu0 %v1190
      %v1192 = vpop.xlane.xlu0 %1191
      %v1193 = vmul.f32 %v1055, %v1189
      %v1194 = vmul.f32 %v1056, %v1192
      %v1195 = vsel %vm1069, %v1193, 0.0
      %v1196 = vsel %vm1069, %v1194, 0.0
      %v1197 = vadd.f32 %v1195, %v1196
      %v1198 = vrot.slane %v1197, 4
      %v1199 = vadd.f32 %v1197, %v1198
      %v1200 = vrot.slane %v1199, 2
      %v1201 = vadd.f32 %v1199, %v1200
      %v1202 = vrot.slane %v1201, 1
      %v1203 = vadd.f32 %v1201, %v1202
      %v1204 = vmul.f32 %v1203, %v1079
      %v1205 = vmul.f32 %v1055, %v1204
      %v1206 = vmul.f32 %v1056, %v1204
      %v1207 = vsel %vm1069, %v1205, 0.0
      %1208 = vadd.xlane.f32.xlu0 %v1207
      %v1209 = vpop.xlane.xlu0 %1208
      %v1210 = vsel %vm1069, %v1206, 0.0
      %1211 = vadd.xlane.f32.xlu0 %v1210
      %v1212 = vpop.xlane.xlu0 %1211
      %v1213 = vsub.f32 %v1047, %v1209
      %v1214 = vsub.f32 %v1049, %v1209
      %v1215 = vsub.f32 %v1051, %v1212
      %v1216 = vsub.f32 %v1053, %v1212
      %v1217 = vmul.f32 %v1213, %v1213
      %v1218 = vmul.f32 %v1214, %v1214
      %v1219 = vmul.f32 %v1215, %v1215
      %v1220 = vmul.f32 %v1216, %v1216
      %v1221 = vadd.f32 %v1217, %v1218
      %1222 = vadd.xlane.f32.xlu0 %v1221
      %v1223 = vpop.xlane.xlu0 %1222
      %v1224 = vadd.f32 %v1219, %v1220
      %1225 = vadd.xlane.f32.xlu0 %v1224
      %v1226 = vpop.xlane.xlu0 %1225
      %v1227 = vmul.f32 %v1055, %v1223
      %v1228 = vmul.f32 %v1056, %v1226
      %v1229 = vsel %vm1069, %v1227, 0.0
      %v1230 = vsel %vm1069, %v1228, 0.0
      %v1231 = vadd.f32 %v1229, %v1230
      %v1232 = vrot.slane %v1231, 4
      %v1233 = vadd.f32 %v1231, %v1232
      %v1234 = vrot.slane %v1233, 2
      %v1235 = vadd.f32 %v1233, %v1234
      %v1236 = vrot.slane %v1235, 1
      %v1237 = vadd.f32 %v1235, %v1236
      %v1238 = vmul.f32 %v1237, %v1079
      %v1239 = vadd.f32 %v1238, 1e-05
      %v1240 = vrsqrt.pop %v1239
      %v1241 = vmul.f32 %v1055, %v1240
      %v1242 = vmul.f32 %v1056, %v1240
      %v1243 = vsel %vm1069, %v1241, 0.0
      %1244 = vadd.xlane.f32.xlu0 %v1243
      %v1245 = vpop.xlane.xlu0 %1244
      %v1246 = vsel %vm1069, %v1242, 0.0
      %1247 = vadd.xlane.f32.xlu0 %v1246
      %v1248 = vpop.xlane.xlu0 %1247
      %v1249 = vmul.f32 %v1245, %v1057
      %v1250 = vmul.f32 %v1248, %v1058
      %1252 = vset.pattern.permute.xlu0 0
      %1253 = vperm.xlu0 %1252, %v1249
      %v1254 = vpop.permute.xlu0 %1253
      %1257 = vset.pattern.permute.xlu0 0
      %1258 = vperm.xlu0 %1257, %v1250
      %v1259 = vpop.permute.xlu0 %1258
      %v1261 = vmul.f32 %v1213, %v1254
      %v1262 = vmul.f32 %v1214, %v1254
      %v1263 = vmul.f32 %v1215, %v1259
      %v1264 = vmul.f32 %v1216, %v1259
      %v1265 = vadd.f32 %v1261, %v1144
      %v1266 = vadd.f32 %v1262, %v1144
      %v1267 = vadd.f32 %v1263, %v1149
      %v1268 = vadd.f32 %v1264, %v1149
      %v1269 = vxor.u32 %v1265, 2147483648
      %v1270 = vxor.u32 %v1266, 2147483648
      %v1271 = vxor.u32 %v1267, 2147483648
      %v1272 = vxor.u32 %v1268, 2147483648
      %v1273 = vmul.f32 %v1269, 1.442695
      %v1274 = vpow.pop %v1273
      %v1275 = vmul.f32 %v1270, 1.442695
      %v1276 = vpow.pop %v1275
      %v1277 = vmul.f32 %v1271, 1.442695
      %v1278 = vpow.pop %v1277
      %v1279 = vmul.f32 %v1272, 1.442695
      %v1280 = vpow.pop %v1279
      %v1281 = vadd.f32 %v1274, 1.0
      %v1282 = vadd.f32 %v1276, 1.0
      %v1283 = vadd.f32 %v1278, 1.0
      %v1284 = vadd.f32 %v1280, 1.0
      %v1285 = vrcp.pop %v1281
      %v1286 = vmul.f32 1.0, %v1285
      %v1287 = vrcp.pop %v1282
      %v1288 = vmul.f32 1.0, %v1287
      %v1289 = vrcp.pop %v1283
      %v1290 = vmul.f32 1.0, %v1289
      %v1291 = vrcp.pop %v1284
      %v1292 = vmul.f32 1.0, %v1291
      %v1293 = vmul.f32 %v1265, %v1286
      %v1294 = vmul.f32 %v1266, %v1288
      %v1295 = vmul.f32 %v1267, %v1290
      %v1296 = vmul.f32 %v1268, %v1292
      %s1297 = scalar_lea.vmem %s285, 32
      %1298 = vst [vmem:[%s1297] sm:$0xff] %v1293
      %1299 = vst [vmem:[%s1297 + $0x8] sm:$0xff] %v1294
      %1300 = vst [vmem:[%s1297 + $0x10] sm:$0xff] %v1295
      %1301 = vst [vmem:[%s1297 + $0x18] sm:$0xff] %v1296
      %s1302 = smul.u32 2, %s18
      %p1303 = scmp.lt.s32.totalorder %s1302, 3
      %s1304 = scalar_select %p1303, %s1302, 3
      %s1305 = smul.addr %s1304, 4
      %s1306 = smul.addr %s1305, 8
      %s1307 = scalar_lea.vmem %s7, %s1306
      // Predicated region
      $region49: #{block_forward.1} parent=47 // pred_check
        %p1308 = pneg %p188
      $region50: #{block_forward.1} parent=47 // pred_check_branch
        %1310 = sbr.rel (%p1308) target = $region52
      $region51: #{block_forward.1} parent=47 // pred_region
        %s1311 = smul.u32 2, %s18
      $region52: #{block_forward.1} parent=47 // pred_fallthru
        _
    $region48: #{block_forward.1} parent=5 // pred_fallthru
      _
    %p1312 = scmp.le.s32.totalorder 2, %s13
    // Predicated region
    $region53: #{block_forward.1} parent=5 // pred_check
      %p1313 = pneg %p1312
    $region54: #{block_forward.1} parent=5 // pred_check_branch
      %1315 = sbr.rel (%p1313) target = $region56
    $region55: #{block_forward.1} parent=5 // pred_region
      %s1316 = ssub.s32 %s13, 2
      // Predicated region
      $region57: #{block_forward.1} parent=55 // pred_check
        %p1317 = pneg %p194
      $region58: #{block_forward.1} parent=55 // pred_check_branch
        %1319 = sbr.rel (%p1317) target = $region60
      $region59: #{block_forward.1} parent=55 // pred_region
        %s1320 = smul.u32 2, %s19
        %p1321 = scmp.lt.s32.totalorder %s1320, 3
        %s1322 = scalar_select %p1321, %s1320, 3
        %s1323 = smul.addr %s1322, 4
        %s1324 = smul.addr %s1323, 8
        %s1325 = scalar_lea.vmem %s7, %s1324
      $region60: #{block_forward.1} parent=55 // pred_fallthru
        _
    $region56: #{block_forward.1} parent=5 // pred_fallthru
      _
  $region6: #{block_forward.1} parent=0 // loop_footer
    %s17 = sadd.s32 1, %s13
  $region7: #{block_forward.1} parent=0 // loop_footer_branch
    %12 = sbr.rel target = $region3
  $region8: #{block_forward.1} parent=0 // loop_exit
    _

</llo_original>
